<compile_context>
chip_gen: v7x
topology: tpu7x:2x2x1
jax: 0.10.0
libtpu: 0.0.40
codegen_flags: <defaults>
</compile_context>

<pallas_src>
import functools

import jax
import jax.numpy as jnp
from jax.experimental import pallas as pl
from jax.experimental.pallas import tpu as pltpu


def _layer_norm(x, g, b, eps=1e-6):
    # PLATO uses nn.LayerNorm(..., eps=1e-06)
    mu = jnp.mean(x, axis=-1, keepdims=True)
    var = jnp.mean((x - mu) ** 2, axis=-1, keepdims=True)
    return (x - mu) * jax.lax.rsqrt(var + eps) * g + b


# ----------------------------------------------------------------------------
# Kernel 1: per-batch K/V projection (K stored pre-transposed, bf16).
# ----------------------------------------------------------------------------
def _kv_project_kernel(x_ref, wk_ref, wv_ref, bkv_ref, kt_ref, v_ref,
                       *, num_heads, head_dim):
    S = x_ref.shape[1]
    x = x_ref[0].astype(jnp.bfloat16)                                    # (S, H)
    k = jnp.dot(x, wk_ref[...], preferred_element_type=jnp.float32) + bkv_ref[0]
    v = jnp.dot(x, wv_ref[...], preferred_element_type=jnp.float32) + bkv_ref[1]
    k = pltpu.einshape("mhd->hmd", k.reshape(S, num_heads, head_dim))    # (nh,S,d)
    v = pltpu.einshape("mhd->hmd", v.reshape(S, num_heads, head_dim))    # (nh,S,d)
    # K pre-transposed to (nh, d, S): the scores matmul contracts K over its
    # sublane dim (standard MXU RHS layout), no per-tile transpose later.
    kt_ref[0] = jnp.swapaxes(k, 1, 2).astype(jnp.bfloat16)               # (nh,d,S)
    v_ref[0] = v.astype(jnp.bfloat16)                                    # (nh,S,d)


# ----------------------------------------------------------------------------
# Kernel 2: attention + FFN over a (batch, query-tile) grid.
# ----------------------------------------------------------------------------
def _block_kernel(x_ref, mask_ref, kt_ref, v_ref,
                  wq_ref, wo_ref, wff1_ref, bff1_ref, wff2_ref, p_ref,
                  o_ref, *, num_heads, head_dim, ffn_chunks):
    TS = x_ref.shape[1]
    H = num_heads * head_dim
    scale = float(head_dim) ** -0.5

    # packed (8, H) params: b_q, b_o, ln1_g, ln1_b, b_ff2, ln2_g, ln2_b, pad
    b_q, b_o = p_ref[0], p_ref[1]
    ln1_g, ln1_b = p_ref[2], p_ref[3]
    b_ff2 = p_ref[4]
    ln2_g, ln2_b = p_ref[5], p_ref[6]

    x_tile = x_ref[0]                                                    # (TS,H) f32

    # ---- attention ---------------------------------------------------------
    q = jnp.dot(x_tile.astype(jnp.bfloat16), wq_ref[...],
                preferred_element_type=jnp.float32) + b_q                # (TS,H)
    q = q * scale
    qh = pltpu.einshape("mhd->hmd", q.reshape(TS, num_heads, head_dim))  # (nh,TS,d)

    masked = (mask_ref[0] != 0)[None, :, :]                              # (1,TS,S)

    scores = jnp.einsum("hqd,hdk->hqk",
                        qh.astype(jnp.bfloat16), kt_ref[0],
                        preferred_element_type=jnp.float32)              # (nh,TS,S)
    scores = jnp.where(masked, -1e10, scores)        # == torch masked_fill_(-1e10)

    # f32 softmax: exp (EUP) + approx reciprocal (EUP)
    m = jnp.max(scores, axis=-1, keepdims=True)
    e = jnp.exp(scores - m)
    attn = e * pl.reciprocal(jnp.sum(e, axis=-1, keepdims=True), approx=True)
    attn = jnp.where(masked, 0.0, attn)              # zero masked probs (torch)

    ctx = jnp.einsum("hqk,hkd->hqd",
                     attn.astype(jnp.bfloat16), v_ref[0],
                     preferred_element_type=jnp.float32)                 # (nh,TS,d)
    ctx = pltpu.einshape("hmd->mhd", ctx).reshape(TS, H)

    attn_out = jnp.dot(ctx.astype(jnp.bfloat16), wo_ref[...],
                       preferred_element_type=jnp.float32) + b_o
    y = _layer_norm(attn_out + x_tile, ln1_g, ln1_b)                     # f32

    # ---- feed forward (GELU intermediate processed in column chunks) --------
    y_bf = y.astype(jnp.bfloat16)
    inner = wff1_ref.shape[1]
    chunk = inner // ffn_chunks
    ff = jnp.zeros((TS, H), jnp.float32)
    for c in range(ffn_chunks):          # static & capped small (<= 4 chunks)
        sl = slice(c * chunk, (c + 1) * chunk)
        h1 = jnp.dot(y_bf, wff1_ref[:, sl],
                     preferred_element_type=jnp.float32) + bff1_ref[0, sl]
        h1 = jax.nn.gelu(h1, approximate=False)          # exact erf GELU (nn.GELU)
        ff = ff + jnp.dot(h1.astype(jnp.bfloat16), wff2_ref[sl, :],
                          preferred_element_type=jnp.float32)
    ff = ff + b_ff2

    o_ref[0] = _layer_norm(ff + y, ln2_g, ln2_b)


# ----------------------------------------------------------------------------
# Wrapper
# ----------------------------------------------------------------------------
def _const_spec(shape, weight_buffers):
    """Resident block (constant index map); single-buffered when supported."""
    index_map = lambda *_: (0,) * len(shape)
    if weight_buffers is not None:
        return pl.BlockSpec(shape, index_map,
                            pipeline_mode=pl.Buffered(weight_buffers))
    return pl.BlockSpec(shape, index_map)


def _vmem_limit(block_bytes):
    """Derive scoped VMEM limit from the actual block budget, clamped to HW."""
    limit = max(int(block_bytes * 1.3) + (4 << 20), 32 << 20)
    cap = 128 << 20
    try:
        cap = int(pltpu.get_tpu_info().vmem_capacity_bytes)
    except Exception:
        pass
    return min(limit, int(cap * 0.9))


def _transformer_block_impl(x, mask, params, *, num_heads, q_tile, ffn_chunks,
                            weight_buffers):
    B, S, H = x.shape
    head_dim = H // num_heads
    inner = params["w_ff1"].shape[1]
    nh, d = num_heads, head_dim
    bf16 = jnp.bfloat16

    # ---- tiling choices ------------------------------------------------------
    if q_tile is None:
        q_tile = S
        for t in (256, 128, 64, 32, 16, 8):     # prefer MXU-height tiles
            if S % t == 0:
                q_tile = t
                break
    assert S % q_tile == 0 and (q_tile == S or q_tile % 8 == 0)
    n_q_tiles = S // q_tile

    if ffn_chunks is None:
        ffn_chunks = 1
        if inner > 2048:
            for n in range(min(4, inner // 2048), 1, -1):
                if inner % n == 0 and (inner // n) % 128 == 0:
                    ffn_chunks = n
                    break

    # ---- parameter repacking -------------------------------------------------
    w_qkv, b_qkv = params["w_qkv"], params["b_qkv"]
    w_q = w_qkv[:, :H].astype(bf16)
    w_k = w_qkv[:, H:2 * H].astype(bf16)
    w_v = w_qkv[:, 2 * H:].astype(bf16)
    b_kv = jnp.concatenate([b_qkv[:, H:2 * H], b_qkv[:, 2 * H:]],
                           axis=0).astype(jnp.float32)                    # (2, H)
    packed = jnp.concatenate(
        [b_qkv[:, :H], params["b_o"], params["ln1_g"], params["ln1_b"],
         params["b_ff2"], params["ln2_g"], params["ln2_b"],
         jnp.zeros((1, H), jnp.float32)], axis=0).astype(jnp.float32)     # (8, H)

    mask_i8 = (mask != 0).astype(jnp.int8)      # nonzero == masked-out position

    # ---- pass 1: K/V projection (K pre-transposed), once per batch ------------
    kv_budget = (2 * S * H * 4                       # x block (f32, dbl buffered)
                 + (weight_buffers or 2) * 2 * 2 * H * H     # w_k, w_v (bf16)
                 + 2 * 2 * (2 * S * H * 2)           # K^T + V outputs (bf16, dbl)
                 + 4 * 4 * S * H)                    # f32 temporaries
    kv_kernel = functools.partial(_kv_project_kernel, num_heads=nh, head_dim=d)
    k_t, v = pl.pallas_call(
        kv_kernel,
        grid=(B,),
        in_specs=[
            pl.BlockSpec((1, S, H), lambda b: (b, 0, 0)),
            _const_spec((H, H), weight_buffers),
            _const_spec((H, H), weight_buffers),
            _const_spec((2, H), weight_buffers),
        ],
        out_specs=[
            pl.BlockSpec((1, nh, d, S), lambda b: (b, 0, 0, 0)),
            pl.BlockSpec((1, nh, S, d), lambda b: (b, 0, 0, 0)),
        ],
        out_shape=[
            jax.ShapeDtypeStruct((B, nh, d, S), bf16),   # K^T (head-major)
            jax.ShapeDtypeStruct((B, nh, S, d), bf16),   # V   (head-major)
        ],
        compiler_params=pltpu.CompilerParams(
            dimension_semantics=("parallel",),
            vmem_limit_bytes=_vmem_limit(kv_budget)),
    )(x, w_k, w_v, b_kv)

    # ---- pass 2: attention + FFN over (batch, query-tile) grid ----------------
    wb = weight_buffers or 2
    blk_budget = (
        wb * 2 * (2 * H * H + 2 * H * inner)            # resident bf16 weights
        + wb * 4 * (8 * H + inner)                      # packed params + b_ff1
        + 2 * 2 * (2 * S * H * 2)                       # K^T + V blocks (bf16)
        + 2 * 2 * (q_tile * H * 4)                      # x tile + out tile
        + 2 * q_tile * S                                # mask tile (int8)
        + 4 * (3 * nh * q_tile * S                      # scores / e / attn (f32)
               + 4 * q_tile * H                         # q/ctx/y/ff temporaries
               + 2 * q_tile * (inner // ffn_chunks)))   # GELU chunk
    blk_kernel = functools.partial(_block_kernel, num_heads=nh, head_dim=d,
                                   ffn_chunks=ffn_chunks)

    flops = B * (24 * S * H * H + 4 * S * S * H)
    transcendentals = B * (nh * S * S + S * inner)
    bytes_accessed = (8 * B * S * H + B * S * S + 4 * B * S * H
                      + 2 * (4 * H * H + 2 * H * inner) + 36 * H + 8 * inner)

    out = pl.pallas_call(
        blk_kernel,
        grid=(B, n_q_tiles),
        in_specs=[
            pl.BlockSpec((1, q_tile, H), lambda b, q: (b, q, 0)),    # x tile
            pl.BlockSpec((1, q_tile, S), lambda b, q: (b, q, 0)),    # mask (int8)
            pl.BlockSpec((1, nh, d, S), lambda b, q: (b, 0, 0, 0)),  # K^T per batch
            pl.BlockSpec((1, nh, S, d), lambda b, q: (b, 0, 0, 0)),  # V   per batch
            _const_spec((H, H), weight_buffers),                     # w_q
            _const_spec((H, H), weight_buffers),                     # w_o
            _const_spec((H, inner), weight_buffers),                 # w_ff1
            _const_spec((1, inner), weight_buffers),                 # b_ff1
            _const_spec((inner, H), weight_buffers),                 # w_ff2
            _const_spec((8, H), weight_buffers),                     # packed params
        ],
        out_specs=pl.BlockSpec((1, q_tile, H), lambda b, q: (b, q, 0)),
        out_shape=jax.ShapeDtypeStruct((B, S, H), jnp.float32),
        compiler_params=pltpu.CompilerParams(
            dimension_semantics=("parallel", "parallel"),
            vmem_limit_bytes=_vmem_limit(blk_budget)),
        cost_estimate=pl.CostEstimate(
            flops=flops, transcendentals=transcendentals,
            bytes_accessed=bytes_accessed),
    )(x, mask_i8, k_t, v,
      w_q, params["w_o"].astype(bf16),
      params["w_ff1"].astype(bf16), params["b_ff1"],
      params["w_ff2"].astype(bf16), packed)
    return out


def transformer_block(x, mask, params, *, num_heads, q_tile=None, ffn_chunks=None):
    try:
        return _transformer_block_impl(
            x, mask, params, num_heads=num_heads, q_tile=q_tile,
            ffn_chunks=ffn_chunks, weight_buffers=1)
    except Exception:
        # Fallback for environments without BlockSpec(pipeline_mode=pl.Buffered(1))
        # support: use default (double) buffering for resident weights.
        return _transformer_block_impl(
            x, mask, params, num_heads=num_heads, q_tile=q_tile,
            ffn_chunks=ffn_chunks, weight_buffers=None)


# ----------------------------------------------------------------------------
# Pure-JAX f32 reference mirroring the PyTorch forward (eval mode).
# ----------------------------------------------------------------------------
def reference(x, mask, params, num_heads):
    B, S, H = x.shape
    d = H // num_heads
    scale = d ** -0.5
    m = (mask > 0.0)[:, None, :, :]

    qkv = x @ params["w_qkv"] + params["b_qkv"][0]
    q, k, v = qkv[..., :H], qkv[..., H:2 * H], qkv[..., 2 * H:]

    def split(t):
        return t.reshape(B, S, num_heads, d).transpose(0, 2, 1, 3)

    q, k, v = split(q), split(k), split(v)
    scores = jnp.einsum("bhqd,bhkd->bhqk", q, k) * scale
    scores = jnp.where(m, -1e10, scores)
    attn = jax.nn.softmax(scores, axis=-1)
    attn = jnp.where(m, 0.0, attn)
    out = jnp.einsum("bhqk,bhkd->bhqd", attn, v)
    out = out.transpose(0, 2, 1, 3).reshape(B, S, H)
    out = out @ params["w_o"] + params["b_o"][0]
    y = _layer_norm(out + x, params["ln1_g"][0], params["ln1_b"][0])
    h1 = jax.nn.gelu(y @ params["w_ff1"] + params["b_ff1"][0], approximate=False)
    ff = h1 @ params["w_ff2"] + params["b_ff2"][0]
    return _layer_norm(ff + y, params["ln2_g"][0], params["ln2_b"][0])


if __name__ == "__main__":
    # head_dim = 128 keeps the per-head minor dim lane-aligned; still small.
    B, S, H, NH = 2, 16, 256, 2
    key = jax.random.PRNGKey(0)
    keys = jax.random.split(key, 12)

    def init(k, shape):
        return jax.random.normal(k, shape, jnp.float32) * 0.02

    params = dict(
        w_qkv=init(keys[0], (H, 3 * H)), b_qkv=init(keys[1], (1, 3 * H)),
        w_o=init(keys[2], (H, H)),       b_o=init(keys[3], (1, H)),
        ln1_g=jnp.ones((1, H), jnp.float32), ln1_b=jnp.zeros((1, H), jnp.float32),
        w_ff1=init(keys[4], (H, 4 * H)), b_ff1=init(keys[5], (1, 4 * H)),
        w_ff2=init(keys[6], (4 * H, H)), b_ff2=init(keys[7], (1, H)),
        ln2_g=jnp.ones((1, H), jnp.float32), ln2_b=jnp.zeros((1, H), jnp.float32),
    )

    x = jax.random.normal(keys[8], (B, S, H), jnp.float32)
    # mask convention (as in PyTorch module): nonzero == masked-out position
    mask = (jax.random.uniform(keys[9], (B, S, S)) < 0.2).astype(jnp.float32)

    out = transformer_block(x, mask, params, num_heads=NH)
    jax.block_until_ready(out)

    ref = reference(x, mask, params, NH)
    assert out.shape == (B, S, H)
    # bf16 matmul operands (f32 accumulation) => relaxed tolerance vs f32 reference
    assert jnp.allclose(out, ref, atol=2e-2, rtol=2e-2), "mismatch vs JAX reference"

    print("KERNEL_OK")
</pallas_src>

<mosaic_0001>
module attributes {stable_mosaic.version = 11 : i64} {
  func.func @_kv_project_kernel(%arg0: i32, %arg1: memref<1x16x256xf32, #tpu.memory_space<vmem>>, %arg2: memref<256x256xbf16, #tpu.memory_space<vmem>>, %arg3: memref<256x256xbf16, #tpu.memory_space<vmem>>, %arg4: memref<2x256xf32, #tpu.memory_space<vmem>>, %arg5: memref<1x2x128x16xbf16, #tpu.memory_space<vmem>>, %arg6: memref<1x2x16x128xbf16, #tpu.memory_space<vmem>>) attributes {dimension_semantics = [#tpu.dimension_semantics<parallel>], iteration_bounds = array<i64: 2>, scalar_prefetch = 0 : i64, scratch_operands = 0 : i64, tpu.core_type = #tpu.core_type<tc>, window_params = [{transform_indices = @transform_0, window_bounds = array<i64: 1, 16, 256>}, {pipeline_mode = #tpu.pipeline_mode<synchronous>, transform_indices = @transform_1, window_bounds = array<i64: 256, 256>}, {pipeline_mode = #tpu.pipeline_mode<synchronous>, transform_indices = @transform_2, window_bounds = array<i64: 256, 256>}, {pipeline_mode = #tpu.pipeline_mode<synchronous>, transform_indices = @transform_3, window_bounds = array<i64: 2, 256>}, {transform_indices = @transform_4, window_bounds = array<i64: 1, 2, 128, 16>}, {transform_indices = @transform_5, window_bounds = array<i64: 1, 2, 16, 128>}]} {
    %c0 = arith.constant 0 : index
    %c0_0 = arith.constant 0 : index
    %c0_1 = arith.constant 0 : index
    %0 = vector.load %arg1[%c0, %c0_0, %c0_1] : memref<1x16x256xf32, #tpu.memory_space<vmem>>, vector<1x16x256xf32>
    %1 = vector.shape_cast %0 : vector<1x16x256xf32> to vector<16x256xf32>
    %2 = arith.truncf %1 : vector<16x256xf32> to vector<16x256xbf16>
    %c0_2 = arith.constant 0 : index
    %c0_3 = arith.constant 0 : index
    %3 = vector.load %arg2[%c0_2, %c0_3] : memref<256x256xbf16, #tpu.memory_space<vmem>>, vector<256x256xbf16>
    %cst = arith.constant dense<0.000000e+00> : vector<16x256xf32>
    %4 = tpu.matmul %2, %3, %cst {dimension_numbers = #tpu.dot_dimension_numbers<[1], [0], [0], [1], [0, 0, 1, 1], [], []>} : vector<16x256xbf16>, vector<256x256xbf16>, vector<16x256xf32> -> vector<16x256xf32>
    %c0_4 = arith.constant 0 : index
    %c0_5 = arith.constant 0 : index
    %5 = vector.load %arg4[%c0_4, %c0_5] : memref<2x256xf32, #tpu.memory_space<vmem>>, vector<1x256xf32>
    %6 = vector.shape_cast %5 : vector<1x256xf32> to vector<256xf32>
    %7 = vector.shape_cast %6 : vector<256xf32> to vector<1x256xf32>
    %8 = vector.broadcast %7 : vector<1x256xf32> to vector<16x256xf32>
    %9 = arith.addf %4, %8 : vector<16x256xf32>
    %c0_6 = arith.constant 0 : index
    %c0_7 = arith.constant 0 : index
    %10 = vector.load %arg3[%c0_6, %c0_7] : memref<256x256xbf16, #tpu.memory_space<vmem>>, vector<256x256xbf16>
    %cst_8 = arith.constant dense<0.000000e+00> : vector<16x256xf32>
    %11 = tpu.matmul %2, %10, %cst_8 {dimension_numbers = #tpu.dot_dimension_numbers<[1], [0], [0], [1], [0, 0, 1, 1], [], []>} : vector<16x256xbf16>, vector<256x256xbf16>, vector<16x256xf32> -> vector<16x256xf32>
    %c1 = arith.constant 1 : index
    %c0_9 = arith.constant 0 : index
    %12 = vector.load %arg4[%c1, %c0_9] : memref<2x256xf32, #tpu.memory_space<vmem>>, vector<1x256xf32>
    %13 = vector.shape_cast %12 : vector<1x256xf32> to vector<256xf32>
    %14 = vector.shape_cast %13 : vector<256xf32> to vector<1x256xf32>
    %15 = vector.broadcast %14 : vector<1x256xf32> to vector<16x256xf32>
    %16 = arith.addf %11, %15 : vector<16x256xf32>
    %17 = vector.shape_cast %9 : vector<16x256xf32> to vector<16x2x128xf32>
    %18 = tpu.transpose %17, [1, 0, 2] : vector<16x2x128xf32> -> vector<2x16x128xf32>
    %19 = vector.shape_cast %16 : vector<16x256xf32> to vector<16x2x128xf32>
    %20 = tpu.transpose %19, [1, 0, 2] : vector<16x2x128xf32> -> vector<2x16x128xf32>
    %21 = tpu.transpose %18, [0, 2, 1] : vector<2x16x128xf32> -> vector<2x128x16xf32>
    %22 = arith.truncf %21 : vector<2x128x16xf32> to vector<2x128x16xbf16>
    %c0_10 = arith.constant 0 : index
    %c0_11 = arith.constant 0 : index
    %c0_12 = arith.constant 0 : index
    %c0_13 = arith.constant 0 : index
    %23 = vector.load %arg5[%c0_10, %c0_11, %c0_12, %c0_13] : memref<1x2x128x16xbf16, #tpu.memory_space<vmem>>, vector<1x2x128x16xbf16>
    %24 = vector.shape_cast %23 : vector<1x2x128x16xbf16> to vector<2x128x16xbf16>
    %25 = vector.shape_cast %22 : vector<2x128x16xbf16> to vector<1x2x128x16xbf16>
    tpu.vector_store %arg5[%c0_10, %c0_11, %c0_12, %c0_13], %25 {strides = array<i32>} : memref<1x2x128x16xbf16, #tpu.memory_space<vmem>>, vector<1x2x128x16xbf16>,
    %26 = arith.truncf %20 : vector<2x16x128xf32> to vector<2x16x128xbf16>
    %c0_14 = arith.constant 0 : index
    %c0_15 = arith.constant 0 : index
    %c0_16 = arith.constant 0 : index
    %c0_17 = arith.constant 0 : index
    %27 = vector.load %arg6[%c0_14, %c0_15, %c0_16, %c0_17] : memref<1x2x16x128xbf16, #tpu.memory_space<vmem>>, vector<1x2x16x128xbf16>
    %28 = vector.shape_cast %27 : vector<1x2x16x128xbf16> to vector<2x16x128xbf16>
    %29 = vector.shape_cast %26 : vector<2x16x128xbf16> to vector<1x2x16x128xbf16>
    tpu.vector_store %arg6[%c0_14, %c0_15, %c0_16, %c0_17], %29 {strides = array<i32>} : memref<1x2x16x128xbf16, #tpu.memory_space<vmem>>, vector<1x2x16x128xbf16>,
    return
  }
  func.func @transform_0(%arg0: i32) -> (i32, i32, i32) {
    %c0_i32 = arith.constant 0 : i32
    %c0_i32_0 = arith.constant 0 : i32
    %c0_i32_1 = arith.constant 0 : i32
    return %arg0, %c0_i32, %c0_i32_0 : i32, i32, i32
  }
  func.func @transform_1(%arg0: i32) -> (i32, i32) {
    %c0_i32 = arith.constant 0 : i32
    %c0_i32_0 = arith.constant 0 : i32
    %c0_i32_1 = arith.constant 0 : i32
    return %c0_i32, %c0_i32_0 : i32, i32
  }
  func.func @transform_2(%arg0: i32) -> (i32, i32) {
    %c0_i32 = arith.constant 0 : i32
    %c0_i32_0 = arith.constant 0 : i32
    %c0_i32_1 = arith.constant 0 : i32
    return %c0_i32, %c0_i32_0 : i32, i32
  }
  func.func @transform_3(%arg0: i32) -> (i32, i32) {
    %c0_i32 = arith.constant 0 : i32
    %c0_i32_0 = arith.constant 0 : i32
    %c0_i32_1 = arith.constant 0 : i32
    return %c0_i32, %c0_i32_0 : i32, i32
  }
  func.func @transform_4(%arg0: i32) -> (i32, i32, i32, i32) {
    %c0_i32 = arith.constant 0 : i32
    %c0_i32_0 = arith.constant 0 : i32
    %c0_i32_1 = arith.constant 0 : i32
    %c0_i32_2 = arith.constant 0 : i32
    return %arg0, %c0_i32, %c0_i32_0, %c0_i32_1 : i32, i32, i32, i32
  }
  func.func @transform_5(%arg0: i32) -> (i32, i32, i32, i32) {
    %c0_i32 = arith.constant 0 : i32
    %c0_i32_0 = arith.constant 0 : i32
    %c0_i32_1 = arith.constant 0 : i32
    %c0_i32_2 = arith.constant 0 : i32
    return %arg0, %c0_i32, %c0_i32_0, %c0_i32_1 : i32, i32, i32, i32
  }
}

module attributes {stable_mosaic.version = 11 : i64} {
  func.func @_kv_project_kernel(%arg0: i32, %arg1: memref<1x16x256xf32, #tpu.memory_space<vmem>>, %arg2: memref<256x256xbf16, #tpu.memory_space<vmem>>, %arg3: memref<256x256xbf16, #tpu.memory_space<vmem>>, %arg4: memref<2x256xf32, #tpu.memory_space<vmem>>, %arg5: memref<1x2x128x16xbf16, #tpu.memory_space<vmem>>, %arg6: memref<1x2x16x128xbf16, #tpu.memory_space<vmem>>) attributes {dimension_semantics = [#tpu.dimension_semantics<parallel>], iteration_bounds = array<i64: 2>, scalar_prefetch = 0 : i64, scratch_operands = 0 : i64, tpu.core_type = #tpu.core_type<tc>, window_params = [{transform_indices = @transform_0, window_bounds = array<i64: 1, 16, 256>}, {pipeline_mode = #tpu.pipeline_mode<synchronous>, transform_indices = @transform_1, window_bounds = array<i64: 256, 256>}, {pipeline_mode = #tpu.pipeline_mode<synchronous>, transform_indices = @transform_2, window_bounds = array<i64: 256, 256>}, {pipeline_mode = #tpu.pipeline_mode<synchronous>, transform_indices = @transform_3, window_bounds = array<i64: 2, 256>}, {transform_indices = @transform_4, window_bounds = array<i64: 1, 2, 128, 16>}, {transform_indices = @transform_5, window_bounds = array<i64: 1, 2, 16, 128>}]} {
    %c0 = arith.constant 0 : index
    %c0_0 = arith.constant 0 : index
    %c0_1 = arith.constant 0 : index
    %0 = vector.load %arg1[%c0, %c0_0, %c0_1] : memref<1x16x256xf32, #tpu.memory_space<vmem>>, vector<1x16x256xf32>
    %1 = vector.shape_cast %0 : vector<1x16x256xf32> to vector<16x256xf32>
    %2 = arith.truncf %1 : vector<16x256xf32> to vector<16x256xbf16>
    %c0_2 = arith.constant 0 : index
    %c0_3 = arith.constant 0 : index
    %3 = vector.load %arg2[%c0_2, %c0_3] : memref<256x256xbf16, #tpu.memory_space<vmem>>, vector<256x256xbf16>
    %cst = arith.constant dense<0.000000e+00> : vector<16x256xf32>
    %4 = tpu.matmul %2, %3, %cst {dimension_numbers = #tpu.dot_dimension_numbers<[1], [0], [0], [1], [0, 0, 1, 1], [], []>} : vector<16x256xbf16>, vector<256x256xbf16>, vector<16x256xf32> -> vector<16x256xf32>
    %c0_4 = arith.constant 0 : index
    %c0_5 = arith.constant 0 : index
    %5 = vector.load %arg4[%c0_4, %c0_5] : memref<2x256xf32, #tpu.memory_space<vmem>>, vector<1x256xf32>
    %6 = vector.shape_cast %5 : vector<1x256xf32> to vector<256xf32>
    %7 = vector.shape_cast %6 : vector<256xf32> to vector<1x256xf32>
    %8 = vector.broadcast %7 : vector<1x256xf32> to vector<16x256xf32>
    %9 = arith.addf %4, %8 : vector<16x256xf32>
    %c0_6 = arith.constant 0 : index
    %c0_7 = arith.constant 0 : index
    %10 = vector.load %arg3[%c0_6, %c0_7] : memref<256x256xbf16, #tpu.memory_space<vmem>>, vector<256x256xbf16>
    %cst_8 = arith.constant dense<0.000000e+00> : vector<16x256xf32>
    %11 = tpu.matmul %2, %10, %cst_8 {dimension_numbers = #tpu.dot_dimension_numbers<[1], [0], [0], [1], [0, 0, 1, 1], [], []>} : vector<16x256xbf16>, vector<256x256xbf16>, vector<16x256xf32> -> vector<16x256xf32>
    %c1 = arith.constant 1 : index
    %c0_9 = arith.constant 0 : index
    %12 = vector.load %arg4[%c1, %c0_9] : memref<2x256xf32, #tpu.memory_space<vmem>>, vector<1x256xf32>
    %13 = vector.shape_cast %12 : vector<1x256xf32> to vector<256xf32>
    %14 = vector.shape_cast %13 : vector<256xf32> to vector<1x256xf32>
    %15 = vector.broadcast %14 : vector<1x256xf32> to vector<16x256xf32>
    %16 = arith.addf %11, %15 : vector<16x256xf32>
    %17 = vector.shape_cast %9 : vector<16x256xf32> to vector<16x2x128xf32>
    %18 = tpu.transpose %17, [1, 0, 2] : vector<16x2x128xf32> -> vector<2x16x128xf32>
    %19 = vector.shape_cast %16 : vector<16x256xf32> to vector<16x2x128xf32>
    %20 = tpu.transpose %19, [1, 0, 2] : vector<16x2x128xf32> -> vector<2x16x128xf32>
    %21 = tpu.transpose %18, [0, 2, 1] : vector<2x16x128xf32> -> vector<2x128x16xf32>
    %22 = arith.truncf %21 : vector<2x128x16xf32> to vector<2x128x16xbf16>
    %c0_10 = arith.constant 0 : index
    %c0_11 = arith.constant 0 : index
    %c0_12 = arith.constant 0 : index
    %c0_13 = arith.constant 0 : index
    %23 = vector.load %arg5[%c0_10, %c0_11, %c0_12, %c0_13] : memref<1x2x128x16xbf16, #tpu.memory_space<vmem>>, vector<1x2x128x16xbf16>
    %24 = vector.shape_cast %23 : vector<1x2x128x16xbf16> to vector<2x128x16xbf16>
    %25 = vector.shape_cast %22 : vector<2x128x16xbf16> to vector<1x2x128x16xbf16>
    tpu.vector_store %arg5[%c0_10, %c0_11, %c0_12, %c0_13], %25 {strides = array<i32>} : memref<1x2x128x16xbf16, #tpu.memory_space<vmem>>, vector<1x2x128x16xbf16>,
    %26 = arith.truncf %20 : vector<2x16x128xf32> to vector<2x16x128xbf16>
    %c0_14 = arith.constant 0 : index
    %c0_15 = arith.constant 0 : index
    %c0_16 = arith.constant 0 : index
    %c0_17 = arith.constant 0 : index
    %27 = vector.load %arg6[%c0_14, %c0_15, %c0_16, %c0_17] : memref<1x2x16x128xbf16, #tpu.memory_space<vmem>>, vector<1x2x16x128xbf16>
    %28 = vector.shape_cast %27 : vector<1x2x16x128xbf16> to vector<2x16x128xbf16>
    %29 = vector.shape_cast %26 : vector<2x16x128xbf16> to vector<1x2x16x128xbf16>
    tpu.vector_store %arg6[%c0_14, %c0_15, %c0_16, %c0_17], %29 {strides = array<i32>} : memref<1x2x16x128xbf16, #tpu.memory_space<vmem>>, vector<1x2x16x128xbf16>,
    return
  }
  func.func @transform_0(%arg0: i32) -> (i32, i32, i32) {
    %c0_i32 = arith.constant 0 : i32
    %c0_i32_0 = arith.constant 0 : i32
    %c0_i32_1 = arith.constant 0 : i32
    return %arg0, %c0_i32, %c0_i32_0 : i32, i32, i32
  }
  func.func @transform_1(%arg0: i32) -> (i32, i32) {
    %c0_i32 = arith.constant 0 : i32
    %c0_i32_0 = arith.constant 0 : i32
    %c0_i32_1 = arith.constant 0 : i32
    return %c0_i32, %c0_i32_0 : i32, i32
  }
  func.func @transform_2(%arg0: i32) -> (i32, i32) {
    %c0_i32 = arith.constant 0 : i32
    %c0_i32_0 = arith.constant 0 : i32
    %c0_i32_1 = arith.constant 0 : i32
    return %c0_i32, %c0_i32_0 : i32, i32
  }
  func.func @transform_3(%arg0: i32) -> (i32, i32) {
    %c0_i32 = arith.constant 0 : i32
    %c0_i32_0 = arith.constant 0 : i32
    %c0_i32_1 = arith.constant 0 : i32
    return %c0_i32, %c0_i32_0 : i32, i32
  }
  func.func @transform_4(%arg0: i32) -> (i32, i32, i32, i32) {
    %c0_i32 = arith.constant 0 : i32
    %c0_i32_0 = arith.constant 0 : i32
    %c0_i32_1 = arith.constant 0 : i32
    %c0_i32_2 = arith.constant 0 : i32
    return %arg0, %c0_i32, %c0_i32_0, %c0_i32_1 : i32, i32, i32, i32
  }
  func.func @transform_5(%arg0: i32) -> (i32, i32, i32, i32) {
    %c0_i32 = arith.constant 0 : i32
    %c0_i32_0 = arith.constant 0 : i32
    %c0_i32_1 = arith.constant 0 : i32
    %c0_i32_2 = arith.constant 0 : i32
    return %arg0, %c0_i32, %c0_i32_0, %c0_i32_1 : i32, i32, i32, i32
  }
}

</mosaic_0001>

<llo_original>
// kernel: tpu_custom_call.1
$region0: #{tpu_custom_call.1}
  #allocation0 [shape = 'u32[]', space=smem, size = 0x4, offset = 0x4, fixed_abs, tag = 'smem constant byte address 0x4 - core index']
  #allocation1 [shape = 'u32[144,128]{1,0:T(1,128)}', space=vmem, size = 0x12000, scoped, tag = 'internal scratch']
  %s0 = inlined_call_operand.hbm [shape: f32[2,16,256], index: 0, kind: input, shape index: {}]
  %s1 = inlined_call_operand.hbm [shape: bf16[256,256], index: 1, kind: input, shape index: {}]
  %s2 = inlined_call_operand.hbm [shape: bf16[256,256], index: 2, kind: input, shape index: {}]
  %s3 = inlined_call_operand.vmem [shape: f32[2,256], index: 3, kind: input, shape index: {}]
  %s4 = inlined_call_operand.vmem [shape: bf16[2,2,128,16], index: 4, kind: output, shape index: {0}]
  %s5 = inlined_call_operand.hbm [shape: bf16[2,2,16,128], index: 5, kind: output, shape index: {1}]
  %6 = xla_tuple %s4, %s5
  %s7 = sld [smem:[#allocation0]]
  $region69: #{tpu_custom_call.1} parent=0
    _
  %s9 = ssub.s32 1, %s7
  %s10 = scalar_select 0, %s9, %s7
  $region1: #{tpu_custom_call.1} parent=0
    #allocation2 [shape = 'u8[32768]{0}', space=vmem, size = 0x8000, scoped, tag = 'input window, operand 0']
    #allocation3 [shape = 's32[2]{0}', space=sflag, size = 0x8, scoped, tag = 'scoped memory for tpu_custom_call.1']
    #allocation4 [shape = 's32[2]{0}', space=sflag, size = 0x8, scoped, tag = 'scoped memory for tpu_custom_call.1']
    #allocation5 [shape = 'u8[131072]{0}', space=vmem, size = 0x20000, scoped, tag = 'input window, operand 1, single buffered']
    #allocation6 [shape = 's32[1]{0}', space=sflag, size = 0x4, scoped, tag = 'scoped memory for tpu_custom_call.1']
    #allocation7 [shape = 'u8[131072]{0}', space=vmem, size = 0x20000, scoped, tag = 'input window, operand 2, single buffered']
    #allocation8 [shape = 'u8[16384]{0}', space=vmem, size = 0x4000, scoped, tag = 'output window, operand 1']
    %11 = vsyncpa [#allocation3], 0
    %s12 = scalar_lea.sflag [#allocation3], 1
    %13 = vsyncpa %s12, 0
    %14 = vsyncpa [#allocation6], 0
    %15 = vsyncpa [#allocation4], 0
    %s16 = scalar_lea.sflag [#allocation4], 1
    %17 = vsyncpa %s16, 0
    loop: start=0, step=1, limit=4
    $region2: #{tpu_custom_call.1} parent=1 // loop_pre_header
      _
    $region3: #{tpu_custom_call.1} parent=1 // loop_header
      %s19 = sphi 0, %s23
      %p20 = scmp.ge.s32.totalorder %s19, 4
      %s29 = sphi 0, %s31
      %s32 = sphi 0, %s29
      %s33 = sphi 0, %s32
      %s49 = sphi 0, %s33
      %s53 = sphi 0, %s53
      %s55 = sphi 0, %s53
      %s56 = sphi 0, %s55
      %s70 = sphi 0, %s56
      %s74 = sphi 0, %s74
      %s76 = sphi 0, %s74
      %s77 = sphi 0, %s76
      %s91 = sphi 0, %s77
      %s95 = sphi 0, %s95
      %s97 = sphi 0, %s95
      %s98 = sphi 0, %s97
      %s112 = sphi 0, %s98
      %s118 = sphi 0, %s120
      %s121 = sphi 0, %s118
      %s122 = sphi 0, %s121
      %s138 = sphi 0, %s122
      %s144 = sphi 0, %s146
      %s147 = sphi 0, %s144
      %s148 = sphi 0, %s147
      %s164 = sphi 0, %s148
    $region4: #{tpu_custom_call.1} parent=1 // loop_header_branch
      %22 = sbr.rel (%p20) target = $region8
    $region5: #{tpu_custom_call.1} parent=1 // loop_body
      %s24 = ssub.s32 %s19, 1
      %s25 = ssub.s32 %s19, 2
      %s26 = sadd.s32 %s19, 1
      %s27 = ssub.s32 %s19, %s26
      %p28 = scmp.eq.s32.totalorder %s27, 0
      %s30 = sadd.s32 %s29, 1
      %s31 = scalar_select %p28, %s29, %s30
      %p34 = pneg %p28
      %p35 = scmp.eq.s32.totalorder %s19, 1
      %p36 = por %p34, %p35
      %p37 = scmp.ne.s32.totalorder %s29, %s32
      %p38 = scmp.eq.s32.totalorder %s19, 0
      %p39 = por %p37, %p38
      %p40 = scmp.ne.s32.totalorder %s29, %s32
      %p41 = scmp.eq.s32.totalorder %s24, 1
      %p42 = por %p40, %p41
      %p43 = scmp.ne.s32.totalorder %s32, %s33
      %p44 = scmp.eq.s32.totalorder %s24, 0
      %p45 = por %p43, %p44
      %p46 = scmp.ne.s32.totalorder %s32, %s33
      %p47 = scmp.eq.s32.totalorder %s25, 1
      %p48 = por %p46, %p47
      %p50 = scmp.ne.s32.totalorder %s33, %s49
      %p51 = scmp.eq.s32.totalorder %s25, 0
      %p52 = por %p50, %p51
      %s54 = sadd.s32 %s53, 1
      %p57 = scmp.eq.s32.totalorder %s19, 1
      %p58 = scmp.ne.s32.totalorder %s53, %s55
      %p59 = scmp.eq.s32.totalorder %s19, 0
      %p60 = por %p58, %p59
      %p61 = scmp.ne.s32.totalorder %s53, %s55
      %p62 = scmp.eq.s32.totalorder %s24, 1
      %p63 = por %p61, %p62
      %p64 = scmp.ne.s32.totalorder %s55, %s56
      %p65 = scmp.eq.s32.totalorder %s24, 0
      %p66 = por %p64, %p65
      %p67 = scmp.ne.s32.totalorder %s55, %s56
      %p68 = scmp.eq.s32.totalorder %s25, 1
      %p69 = por %p67, %p68
      %p71 = scmp.ne.s32.totalorder %s56, %s70
      %p72 = scmp.eq.s32.totalorder %s25, 0
      %p73 = por %p71, %p72
      %s75 = sadd.s32 %s74, 1
      %p78 = scmp.eq.s32.totalorder %s19, 1
      %p79 = scmp.ne.s32.totalorder %s74, %s76
      %p80 = scmp.eq.s32.totalorder %s19, 0
      %p81 = por %p79, %p80
      %p82 = scmp.ne.s32.totalorder %s74, %s76
      %p83 = scmp.eq.s32.totalorder %s24, 1
      %p84 = por %p82, %p83
      %p85 = scmp.ne.s32.totalorder %s76, %s77
      %p86 = scmp.eq.s32.totalorder %s24, 0
      %p87 = por %p85, %p86
      %p88 = scmp.ne.s32.totalorder %s76, %s77
      %p89 = scmp.eq.s32.totalorder %s25, 1
      %p90 = por %p88, %p89
      %p92 = scmp.ne.s32.totalorder %s77, %s91
      %p93 = scmp.eq.s32.totalorder %s25, 0
      %p94 = por %p92, %p93
      %s96 = sadd.s32 %s95, 1
      %p99 = scmp.eq.s32.totalorder %s19, 1
      %p100 = scmp.ne.s32.totalorder %s95, %s97
      %p101 = scmp.eq.s32.totalorder %s19, 0
      %p102 = por %p100, %p101
      %p103 = scmp.ne.s32.totalorder %s95, %s97
      %p104 = scmp.eq.s32.totalorder %s24, 1
      %p105 = por %p103, %p104
      %p106 = scmp.ne.s32.totalorder %s97, %s98
      %p107 = scmp.eq.s32.totalorder %s24, 0
      %p108 = por %p106, %p107
      %p109 = scmp.ne.s32.totalorder %s97, %s98
      %p110 = scmp.eq.s32.totalorder %s25, 1
      %p111 = por %p109, %p110
      %p113 = scmp.ne.s32.totalorder %s98, %s112
      %p114 = scmp.eq.s32.totalorder %s25, 0
      %p115 = por %p113, %p114
      %s116 = ssub.s32 %s19, %s26
      %p117 = scmp.eq.s32.totalorder %s116, 0
      %s119 = sadd.s32 %s118, 1
      %s120 = scalar_select %p117, %s118, %s119
      %p123 = pneg %p117
      %p124 = scmp.eq.s32.totalorder %s19, 1
      %p125 = por %p123, %p124
      %p126 = scmp.ne.s32.totalorder %s118, %s121
      %p127 = scmp.eq.s32.totalorder %s19, 0
      %p128 = por %p126, %p127
      %p129 = scmp.ne.s32.totalorder %s118, %s121
      %p130 = scmp.eq.s32.totalorder %s24, 1
      %p131 = por %p129, %p130
      %p132 = scmp.ne.s32.totalorder %s121, %s122
      %p133 = scmp.eq.s32.totalorder %s24, 0
      %p134 = por %p132, %p133
      %p135 = scmp.ne.s32.totalorder %s121, %s122
      %p136 = scmp.eq.s32.totalorder %s25, 1
      %p137 = por %p135, %p136
      %p139 = scmp.ne.s32.totalorder %s122, %s138
      %p140 = scmp.eq.s32.totalorder %s25, 0
      %p141 = por %p139, %p140
      %s142 = ssub.s32 %s19, %s26
      %p143 = scmp.eq.s32.totalorder %s142, 0
      %s145 = sadd.s32 %s144, 1
      %s146 = scalar_select %p143, %s144, %s145
      %p149 = pneg %p143
      %p150 = scmp.eq.s32.totalorder %s19, 1
      %p151 = por %p149, %p150
      %p152 = scmp.ne.s32.totalorder %s144, %s147
      %p153 = scmp.eq.s32.totalorder %s19, 0
      %p154 = por %p152, %p153
      %p155 = scmp.ne.s32.totalorder %s144, %s147
      %p156 = scmp.eq.s32.totalorder %s24, 1
      %p157 = por %p155, %p156
      %p158 = scmp.ne.s32.totalorder %s147, %s148
      %p159 = scmp.eq.s32.totalorder %s24, 0
      %p160 = por %p158, %p159
      %p161 = scmp.ne.s32.totalorder %s147, %s148
      %p162 = scmp.eq.s32.totalorder %s25, 1
      %p163 = por %p161, %p162
      %p165 = scmp.ne.s32.totalorder %s148, %s164
      %p166 = scmp.eq.s32.totalorder %s25, 0
      %p167 = por %p165, %p166
      %p168 = scmp.le.s32.totalorder 1, %s19
      %p169 = scmp.lt.s32.totalorder %s19, 3
      %p170 = pnand %p168, %p169
      %p171 = pneg %p170
      // Predicated region
      $region9: #{tpu_custom_call.1} parent=5 // pred_check
        _
      $region10: #{tpu_custom_call.1} parent=5 // pred_check_branch
        %173 = sbr.rel (%p170) target = $region12
      $region11: #{tpu_custom_call.1} parent=5 // pred_region
        %s174 = ssub.s32 %s19, 1
        // Predicated region
        $region13: #{tpu_custom_call.1} parent=11 // pred_check
          %p175 = pneg %p66
        $region14: #{tpu_custom_call.1} parent=11 // pred_check_branch
          %177 = sbr.rel (%p175) target = $region16
        $region15: #{tpu_custom_call.1} parent=11 // pred_region
          %s179 = ssub.s32 4096, 4096
          %180 = vsyncadd [#allocation6], %s179
          %s181 = sshll.u32 [#allocation5], 4
          %s182 = int_to_ptr.vmem [resolvable:$true] %s181
          %187 = dma.hbm_to_vmem [thread:$0]  %s1, 4096, %s182, [#allocation6], 128, 128, 8
        $region16: #{tpu_custom_call.1} parent=11 // pred_fallthru
          _
        // Predicated region
        $region17: #{tpu_custom_call.1} parent=11 // pred_check
          %p188 = pneg %p87
        $region18: #{tpu_custom_call.1} parent=11 // pred_check_branch
          %190 = sbr.rel (%p188) target = $region20
        $region19: #{tpu_custom_call.1} parent=11 // pred_region
          %s192 = ssub.s32 4096, 4096
          %193 = vsyncadd [#allocation6], %s192
          %s194 = sshll.u32 [#allocation7], 4
          %s195 = int_to_ptr.vmem [resolvable:$true] %s194
          %200 = dma.hbm_to_vmem [thread:$0]  %s2, 4096, %s195, [#allocation6], 128, 128, 8
        $region20: #{tpu_custom_call.1} parent=11 // pred_fallthru
          _
        // Predicated region
        $region21: #{tpu_custom_call.1} parent=11 // pred_check
          %p201 = pneg %p108
        $region22: #{tpu_custom_call.1} parent=11 // pred_check_branch
          %203 = sbr.rel (%p201) target = $region24
        $region23: #{tpu_custom_call.1} parent=11 // pred_region
          _
        $region24: #{tpu_custom_call.1} parent=11 // pred_fallthru
          _
      $region12: #{tpu_custom_call.1} parent=5 // pred_fallthru
        _
      %p204 = scmp.lt.s32.totalorder %s19, 2
      // Predicated region
      $region25: #{tpu_custom_call.1} parent=5 // pred_check
        %p205 = pneg %p204
      $region26: #{tpu_custom_call.1} parent=5 // pred_check_branch
        %207 = sbr.rel (%p205) target = $region28
      $region27: #{tpu_custom_call.1} parent=5 // pred_region
        // Predicated region
        $region29: #{tpu_custom_call.1} parent=27 // pred_check
          %p208 = pneg %p39
        $region30: #{tpu_custom_call.1} parent=27 // pred_check_branch
          %210 = sbr.rel (%p208) target = $region32
        $region31: #{tpu_custom_call.1} parent=27 // pred_region
          %s211 = sand.u32 %s29, 1
          %s212 = scalar_lea.sflag [#allocation3], %s211
          %s213 = sand.u32 %s29, 1
          %s214 = smul.addr %s213, 32
          %s215 = scalar_lea.vmem [#allocation2], %s214
          %s217 = ssub.s32 512, 512
          %218 = vsyncadd %s212, %s217
          %s219 = smul.addr %s19, 4
          %s220 = smul.addr %s219, 128
          %s221 = scalar_lea.hbm %s0, %s220
          %s222 = sshll.u32 %s215, 4
          %s223 = int_to_ptr.vmem [resolvable:$true] %s222
          %228 = dma.hbm_to_vmem [thread:$0]  %s221, 512, %s223, %s212, 256, 256, 16
        $region32: #{tpu_custom_call.1} parent=27 // pred_fallthru
          _
      $region28: #{tpu_custom_call.1} parent=5 // pred_fallthru
        _
      %p229 = scmp.le.s32.totalorder 1, %s19
      %p230 = scmp.lt.s32.totalorder %s19, 3
      %p231 = pnand %p229, %p230
      %p232 = pneg %p231
      // Predicated region
      $region33: #{tpu_custom_call.1} parent=5 // pred_check
        _
      $region34: #{tpu_custom_call.1} parent=5 // pred_check_branch
        %234 = sbr.rel (%p231) target = $region36
      $region35: #{tpu_custom_call.1} parent=5 // pred_region
        %s235 = ssub.s32 %s19, 1
        %s236 = sand.u32 %s32, 1
        %s237 = scalar_lea.sflag [#allocation3], %s236
        %s238 = sand.u32 %s32, 1
        %s239 = smul.addr %s238, 32
        %s240 = scalar_lea.vmem [#allocation2], %s239
        // Predicated region
        $region37: #{tpu_custom_call.1} parent=35 // pred_check
          %p241 = pneg %p45
        $region38: #{tpu_custom_call.1} parent=35 // pred_check_branch
          %243 = sbr.rel (%p241) target = $region40
        $region39: #{tpu_custom_call.1} parent=35 // pred_region
          %244 = dma.done %s237, 512
        $region40: #{tpu_custom_call.1} parent=35 // pred_fallthru
          _
        // Predicated region
        $region41: #{tpu_custom_call.1} parent=35 // pred_check
          %p245 = pneg %p66
        $region42: #{tpu_custom_call.1} parent=35 // pred_check_branch
          %247 = sbr.rel (%p245) target = $region44
        $region43: #{tpu_custom_call.1} parent=35 // pred_region
          %248 = dma.done [#allocation6], 4096
        $region44: #{tpu_custom_call.1} parent=35 // pred_fallthru
          _
        // Predicated region
        $region45: #{tpu_custom_call.1} parent=35 // pred_check
          %p249 = pneg %p87
        $region46: #{tpu_custom_call.1} parent=35 // pred_check_branch
          %251 = sbr.rel (%p249) target = $region48
        $region47: #{tpu_custom_call.1} parent=35 // pred_region
          %252 = dma.done [#allocation6], 4096
        $region48: #{tpu_custom_call.1} parent=35 // pred_fallthru
          _
        %s253 = sand.u32 %s32, 1
        %s254 = scalar_lea.sflag [#allocation3], %s253
        %s255 = sand.u32 %s32, 1
        %s256 = smul.addr %s255, 32
        %s257 = scalar_lea.vmem [#allocation2], %s256
        %p258 = pneg %p45
        %p259 = pneg %p42
        %p260 = pneg %p66
        %p261 = pneg %p63
        %p262 = pneg %p87
        %p263 = pneg %p84
        %p264 = pneg %p108
        %p265 = pneg %p105
        %p266 = pneg %p134
        %p267 = pneg %p131
        %p268 = scmp.lt.s32.totalorder %s24, 1
        %s269 = scalar_select %p268, %s24, 1
        %s270 = smul.addr %s269, 32
        %s271 = smul.addr %s270, 4
        %s272 = scalar_lea.vmem %s4, %s271
        %p273 = pneg %p160
        %p274 = pneg %p157
        %s275 = sand.u32 %s147, 1
        %s276 = scalar_lea.sflag [#allocation4], %s275
        %s277 = sand.u32 %s147, 1
        %s278 = smul.addr %s277, 16
        %s279 = scalar_lea.vmem [#allocation8], %s278
        %p280 = scmp.lt.s32.totalorder %s24, 1
        %s281 = scalar_select %p280, %s24, 1
        %s282 = smul.addr %s281, 32
        %s283 = smul.addr %s282, 4
        %s284 = scalar_lea.vmem %s4, %s283
        %v285 = vld [vmem:[%s240] sm:$0xff]
        %v286 = vld [vmem:[%s240 + $0x8] sm:$0xff]
        %v287 = vld [vmem:[%s240 + $0x10] sm:$0xff]
        %v288 = vld [vmem:[%s240 + $0x18] sm:$0xff]
        %v289 = vpack.c.bf16 %v287, %v285
        %v290 = vpack.c.bf16 %v288, %v286
        %v291 = vld [vmem:[#allocation5] sm:$0xff]
        %v292 = vld [vmem:[#allocation5 + $0x8] sm:$0xff]
        %v293 = vld [vmem:[#allocation5 + $0x10] sm:$0xff]
        %v294 = vld [vmem:[#allocation5 + $0x18] sm:$0xff]
        %v295 = vld [vmem:[#allocation5 + $0x20] sm:$0xff]
        %v296 = vld [vmem:[#allocation5 + $0x28] sm:$0xff]
        %v297 = vld [vmem:[#allocation5 + $0x30] sm:$0xff]
        %v298 = vld [vmem:[#allocation5 + $0x38] sm:$0xff]
        %v299 = vld [vmem:[#allocation5 + $0x40] sm:$0xff]
        %v300 = vld [vmem:[#allocation5 + $0x48] sm:$0xff]
        %v301 = vld [vmem:[#allocation5 + $0x50] sm:$0xff]
        %v302 = vld [vmem:[#allocation5 + $0x58] sm:$0xff]
        %v303 = vld [vmem:[#allocation5 + $0x60] sm:$0xff]
        %v304 = vld [vmem:[#allocation5 + $0x68] sm:$0xff]
        %v305 = vld [vmem:[#allocation5 + $0x70] sm:$0xff]
        %v306 = vld [vmem:[#allocation5 + $0x78] sm:$0xff]
        %v307 = vld [vmem:[#allocation5 + $0x80] sm:$0xff]
        %v308 = vld [vmem:[#allocation5 + $0x88] sm:$0xff]
        %v309 = vld [vmem:[#allocation5 + $0x90] sm:$0xff]
        %v310 = vld [vmem:[#allocation5 + $0x98] sm:$0xff]
        %v311 = vld [vmem:[#allocation5 + $0xa0] sm:$0xff]
        %v312 = vld [vmem:[#allocation5 + $0xa8] sm:$0xff]
        %v313 = vld [vmem:[#allocation5 + $0xb0] sm:$0xff]
        %v314 = vld [vmem:[#allocation5 + $0xb8] sm:$0xff]
        %v315 = vld [vmem:[#allocation5 + $0xc0] sm:$0xff]
        %v316 = vld [vmem:[#allocation5 + $0xc8] sm:$0xff]
        %v317 = vld [vmem:[#allocation5 + $0xd0] sm:$0xff]
        %v318 = vld [vmem:[#allocation5 + $0xd8] sm:$0xff]
        %v319 = vld [vmem:[#allocation5 + $0xe0] sm:$0xff]
        %v320 = vld [vmem:[#allocation5 + $0xe8] sm:$0xff]
        %v321 = vld [vmem:[#allocation5 + $0xf0] sm:$0xff]
        %v322 = vld [vmem:[#allocation5 + $0xf8] sm:$0xff]
        %v323 = vld [vmem:[%s3] ss:$2 sm:$0x3]
        %v325 = vlaneseq
        %v326 = vshrl.u32 %v325, 7
        %v327 = vsub.s32 0, %v326
        %v328 = vrot.slane %v323, %v327
        %v329 = vlaneseq
        %v330 = vshrl.u32 %v329, 7
        %v331 = vsub.s32 1, %v330
        %v332 = vrot.slane %v323, %v331
        %v367 = vunpack.c.l.b16 %v291
        %v368 = vunpack.c.h.b16 %v291
        %v369 = vunpack.c.l.b16 %v292
        %v370 = vunpack.c.h.b16 %v292
        %v371 = vunpack.c.l.b16 %v293
        %v372 = vunpack.c.h.b16 %v293
        %v373 = vunpack.c.l.b16 %v294
        %v374 = vunpack.c.h.b16 %v294
        %v375 = vunpack.c.l.b16 %v295
        %v376 = vunpack.c.h.b16 %v295
        %v377 = vunpack.c.l.b16 %v296
        %v378 = vunpack.c.h.b16 %v296
        %v379 = vunpack.c.l.b16 %v297
        %v380 = vunpack.c.h.b16 %v297
        %v381 = vunpack.c.l.b16 %v298
        %v382 = vunpack.c.h.b16 %v298
        %v383 = vunpack.c.l.b16 %v299
        %v384 = vunpack.c.h.b16 %v299
        %v385 = vunpack.c.l.b16 %v300
        %v386 = vunpack.c.h.b16 %v300
        %v387 = vunpack.c.l.b16 %v301
        %v388 = vunpack.c.h.b16 %v301
        %v389 = vunpack.c.l.b16 %v302
        %v390 = vunpack.c.h.b16 %v302
        %v391 = vunpack.c.l.b16 %v303
        %v392 = vunpack.c.h.b16 %v303
        %v393 = vunpack.c.l.b16 %v304
        %v394 = vunpack.c.h.b16 %v304
        %v395 = vunpack.c.l.b16 %v305
        %v396 = vunpack.c.h.b16 %v305
        %v397 = vunpack.c.l.b16 %v306
        %v398 = vunpack.c.h.b16 %v306
        %v399 = vunpack.c.l.b16 %v307
        %v400 = vunpack.c.h.b16 %v307
        %v401 = vunpack.c.l.b16 %v308
        %v402 = vunpack.c.h.b16 %v308
        %v403 = vunpack.c.l.b16 %v309
        %v404 = vunpack.c.h.b16 %v309
        %v405 = vunpack.c.l.b16 %v310
        %v406 = vunpack.c.h.b16 %v310
        %v407 = vunpack.c.l.b16 %v311
        %v408 = vunpack.c.h.b16 %v311
        %v409 = vunpack.c.l.b16 %v312
        %v410 = vunpack.c.h.b16 %v312
        %v411 = vunpack.c.l.b16 %v313
        %v412 = vunpack.c.h.b16 %v313
        %v413 = vunpack.c.l.b16 %v314
        %v414 = vunpack.c.h.b16 %v314
        %v415 = vunpack.c.l.b16 %v315
        %v416 = vunpack.c.h.b16 %v315
        %v417 = vunpack.c.l.b16 %v316
        %v418 = vunpack.c.h.b16 %v316
        %v419 = vunpack.c.l.b16 %v317
        %v420 = vunpack.c.h.b16 %v317
        %v421 = vunpack.c.l.b16 %v318
        %v422 = vunpack.c.h.b16 %v318
        %v423 = vunpack.c.l.b16 %v319
        %v424 = vunpack.c.h.b16 %v319
        %v425 = vunpack.c.l.b16 %v320
        %v426 = vunpack.c.h.b16 %v320
        %v427 = vunpack.c.l.b16 %v321
        %v428 = vunpack.c.h.b16 %v321
        %v429 = vunpack.c.l.b16 %v322
        %v430 = vunpack.c.h.b16 %v322
        %v431 = vpack.c.b16 %v369, %v367
        %v432 = vpack.c.b16 %v370, %v368
        %v433 = vpack.c.b16 %v373, %v371
        %v434 = vpack.c.b16 %v374, %v372
        %v435 = vpack.c.b16 %v377, %v375
        %v436 = vpack.c.b16 %v378, %v376
        %v437 = vpack.c.b16 %v381, %v379
        %v438 = vpack.c.b16 %v382, %v380
        %v439 = vpack.c.b16 %v385, %v383
        %v440 = vpack.c.b16 %v386, %v384
        %v441 = vpack.c.b16 %v389, %v387
        %v442 = vpack.c.b16 %v390, %v388
        %v443 = vpack.c.b16 %v393, %v391
        %v444 = vpack.c.b16 %v394, %v392
        %v445 = vpack.c.b16 %v397, %v395
        %v446 = vpack.c.b16 %v398, %v396
        %v447 = vpack.c.b16 %v401, %v399
        %v448 = vpack.c.b16 %v402, %v400
        %v449 = vpack.c.b16 %v405, %v403
        %v450 = vpack.c.b16 %v406, %v404
        %v451 = vpack.c.b16 %v409, %v407
        %v452 = vpack.c.b16 %v410, %v408
        %v453 = vpack.c.b16 %v413, %v411
        %v454 = vpack.c.b16 %v414, %v412
        %v455 = vpack.c.b16 %v417, %v415
        %v456 = vpack.c.b16 %v418, %v416
        %v457 = vpack.c.b16 %v421, %v419
        %v458 = vpack.c.b16 %v422, %v420
        %v459 = vpack.c.b16 %v425, %v423
        %v460 = vpack.c.b16 %v426, %v424
        %v461 = vpack.c.b16 %v429, %v427
        %v462 = vpack.c.b16 %v430, %v428
        %495 = vmatprep.subr.bf16.mxu0 %v432
        %496 = vmatpush1.bf16.msra.mxu0 %v431
        %497 = vmatprep.subr.bf16.mxu0 %v434
        %498 = vmatpush1.bf16.msra.mxu0 %v433
        %499 = vmatprep.subr.bf16.mxu0 %v436
        %500 = vmatpush1.bf16.msra.mxu0 %v435
        %501 = vmatprep.subr.bf16.mxu0 %v438
        %502 = vmatpush1.bf16.msra.mxu0 %v437
        %503 = vmatprep.subr.bf16.mxu0 %v440
        %504 = vmatpush1.bf16.msra.mxu0 %v439
        %505 = vmatprep.subr.bf16.mxu0 %v442
        %506 = vmatpush1.bf16.msra.mxu0 %v441
        %507 = vmatprep.subr.bf16.mxu0 %v444
        %508 = vmatpush1.bf16.msra.mxu0 %v443
        %509 = vmatprep.subr.bf16.mxu0 %v446
        %510 = vmatpush1.bf16.msra.mxu0 %v445
        %511 = vmatprep.subr.bf16.mxu0 %v448
        %512 = vmatpush1.bf16.msra.mxu0 %v447
        %513 = vmatprep.subr.bf16.mxu0 %v450
        %514 = vmatpush1.bf16.msra.mxu0 %v449
        %515 = vmatprep.subr.bf16.mxu0 %v452
        %516 = vmatpush1.bf16.msra.mxu0 %v451
        %517 = vmatprep.subr.bf16.mxu0 %v454
        %518 = vmatpush1.bf16.msra.mxu0 %v453
        %519 = vmatprep.subr.bf16.mxu0 %v456
        %520 = vmatpush1.bf16.msra.mxu0 %v455
        %521 = vmatprep.subr.bf16.mxu0 %v458
        %522 = vmatpush1.bf16.msra.mxu0 %v457
        %523 = vmatprep.subr.bf16.mxu0 %v460
        %524 = vmatpush1.bf16.msra.mxu0 %v459
        %525 = vmatprep.subr.bf16.mxu0 %v462
        %526 = vmatpush1.bf16.msra.mxu0 %v461
        %527 = vmatprep.mubr.bf16.mxu0 %v290
        %528 = vmatmul.mubr.bf16.gmra.mrb[0].mxu0 %v289
        %v529 = vpop.f32.mrb[0].mxu0
        %v530 = vadd.f32 %v328, %v529
        %v531 = vpop.f32.mrb[0].mxu0
        %v532 = vadd.f32 %v332, %v531
        %v533 = vpop.f32.mrb[0].mxu0
        %v534 = vadd.f32 %v328, %v533
        %v535 = vpop.f32.mrb[0].mxu0
        %v536 = vadd.f32 %v332, %v535
        %537 = vdwg.mxu0
        %v538 = vld [vmem:[#allocation7] sm:$0xff]
        %v539 = vld [vmem:[#allocation7 + $0x8] sm:$0xff]
        %v540 = vld [vmem:[#allocation7 + $0x10] sm:$0xff]
        %v541 = vld [vmem:[#allocation7 + $0x18] sm:$0xff]
        %v542 = vld [vmem:[#allocation7 + $0x20] sm:$0xff]
        %v543 = vld [vmem:[#allocation7 + $0x28] sm:$0xff]
        %v544 = vld [vmem:[#allocation7 + $0x30] sm:$0xff]
        %v545 = vld [vmem:[#allocation7 + $0x38] sm:$0xff]
        %v546 = vld [vmem:[#allocation7 + $0x40] sm:$0xff]
        %v547 = vld [vmem:[#allocation7 + $0x48] sm:$0xff]
        %v548 = vld [vmem:[#allocation7 + $0x50] sm:$0xff]
        %v549 = vld [vmem:[#allocation7 + $0x58] sm:$0xff]
        %v550 = vld [vmem:[#allocation7 + $0x60] sm:$0xff]
        %v551 = vld [vmem:[#allocation7 + $0x68] sm:$0xff]
        %v552 = vld [vmem:[#allocation7 + $0x70] sm:$0xff]
        %v553 = vld [vmem:[#allocation7 + $0x78] sm:$0xff]
        %v554 = vld [vmem:[#allocation7 + $0x80] sm:$0xff]
        %v555 = vld [vmem:[#allocation7 + $0x88] sm:$0xff]
        %v556 = vld [vmem:[#allocation7 + $0x90] sm:$0xff]
        %v557 = vld [vmem:[#allocation7 + $0x98] sm:$0xff]
        %v558 = vld [vmem:[#allocation7 + $0xa0] sm:$0xff]
        %v559 = vld [vmem:[#allocation7 + $0xa8] sm:$0xff]
        %v560 = vld [vmem:[#allocation7 + $0xb0] sm:$0xff]
        %v561 = vld [vmem:[#allocation7 + $0xb8] sm:$0xff]
        %v562 = vld [vmem:[#allocation7 + $0xc0] sm:$0xff]
        %v563 = vld [vmem:[#allocation7 + $0xc8] sm:$0xff]
        %v564 = vld [vmem:[#allocation7 + $0xd0] sm:$0xff]
        %v565 = vld [vmem:[#allocation7 + $0xd8] sm:$0xff]
        %v566 = vld [vmem:[#allocation7 + $0xe0] sm:$0xff]
        %v567 = vld [vmem:[#allocation7 + $0xe8] sm:$0xff]
        %v568 = vld [vmem:[#allocation7 + $0xf0] sm:$0xff]
        %v569 = vld [vmem:[#allocation7 + $0xf8] sm:$0xff]
        %s570 = scalar_lea.vmem %s3, 1
        %v571 = vld [vmem:[%s570] ss:$2 sm:$0x3]
        %v573 = vlaneseq
        %v574 = vshrl.u32 %v573, 7
        %v575 = vsub.s32 0, %v574
        %v576 = vrot.slane %v571, %v575
        %v577 = vlaneseq
        %v578 = vshrl.u32 %v577, 7
        %v579 = vsub.s32 1, %v578
        %v580 = vrot.slane %v571, %v579
        %v615 = vunpack.c.l.b16 %v538
        %v616 = vunpack.c.h.b16 %v538
        %v617 = vunpack.c.l.b16 %v539
        %v618 = vunpack.c.h.b16 %v539
        %v619 = vunpack.c.l.b16 %v540
        %v620 = vunpack.c.h.b16 %v540
        %v621 = vunpack.c.l.b16 %v541
        %v622 = vunpack.c.h.b16 %v541
        %v623 = vunpack.c.l.b16 %v542
        %v624 = vunpack.c.h.b16 %v542
        %v625 = vunpack.c.l.b16 %v543
        %v626 = vunpack.c.h.b16 %v543
        %v627 = vunpack.c.l.b16 %v544
        %v628 = vunpack.c.h.b16 %v544
        %v629 = vunpack.c.l.b16 %v545
        %v630 = vunpack.c.h.b16 %v545
        %v631 = vunpack.c.l.b16 %v546
        %v632 = vunpack.c.h.b16 %v546
        %v633 = vunpack.c.l.b16 %v547
        %v634 = vunpack.c.h.b16 %v547
        %v635 = vunpack.c.l.b16 %v548
        %v636 = vunpack.c.h.b16 %v548
        %v637 = vunpack.c.l.b16 %v549
        %v638 = vunpack.c.h.b16 %v549
        %v639 = vunpack.c.l.b16 %v550
        %v640 = vunpack.c.h.b16 %v550
        %v641 = vunpack.c.l.b16 %v551
        %v642 = vunpack.c.h.b16 %v551
        %v643 = vunpack.c.l.b16 %v552
        %v644 = vunpack.c.h.b16 %v552
        %v645 = vunpack.c.l.b16 %v553
        %v646 = vunpack.c.h.b16 %v553
        %v647 = vunpack.c.l.b16 %v554
        %v648 = vunpack.c.h.b16 %v554
        %v649 = vunpack.c.l.b16 %v555
        %v650 = vunpack.c.h.b16 %v555
        %v651 = vunpack.c.l.b16 %v556
        %v652 = vunpack.c.h.b16 %v556
        %v653 = vunpack.c.l.b16 %v557
        %v654 = vunpack.c.h.b16 %v557
        %v655 = vunpack.c.l.b16 %v558
        %v656 = vunpack.c.h.b16 %v558
        %v657 = vunpack.c.l.b16 %v559
        %v658 = vunpack.c.h.b16 %v559
        %v659 = vunpack.c.l.b16 %v560
        %v660 = vunpack.c.h.b16 %v560
        %v661 = vunpack.c.l.b16 %v561
        %v662 = vunpack.c.h.b16 %v561
        %v663 = vunpack.c.l.b16 %v562
        %v664 = vunpack.c.h.b16 %v562
        %v665 = vunpack.c.l.b16 %v563
        %v666 = vunpack.c.h.b16 %v563
        %v667 = vunpack.c.l.b16 %v564
        %v668 = vunpack.c.h.b16 %v564
        %v669 = vunpack.c.l.b16 %v565
        %v670 = vunpack.c.h.b16 %v565
        %v671 = vunpack.c.l.b16 %v566
        %v672 = vunpack.c.h.b16 %v566
        %v673 = vunpack.c.l.b16 %v567
        %v674 = vunpack.c.h.b16 %v567
        %v675 = vunpack.c.l.b16 %v568
        %v676 = vunpack.c.h.b16 %v568
        %v677 = vunpack.c.l.b16 %v569
        %v678 = vunpack.c.h.b16 %v569
        %v679 = vpack.c.b16 %v617, %v615
        %v680 = vpack.c.b16 %v618, %v616
        %v681 = vpack.c.b16 %v621, %v619
        %v682 = vpack.c.b16 %v622, %v620
        %v683 = vpack.c.b16 %v625, %v623
        %v684 = vpack.c.b16 %v626, %v624
        %v685 = vpack.c.b16 %v629, %v627
        %v686 = vpack.c.b16 %v630, %v628
        %v687 = vpack.c.b16 %v633, %v631
        %v688 = vpack.c.b16 %v634, %v632
        %v689 = vpack.c.b16 %v637, %v635
        %v690 = vpack.c.b16 %v638, %v636
        %v691 = vpack.c.b16 %v641, %v639
        %v692 = vpack.c.b16 %v642, %v640
        %v693 = vpack.c.b16 %v645, %v643
        %v694 = vpack.c.b16 %v646, %v644
        %v695 = vpack.c.b16 %v649, %v647
        %v696 = vpack.c.b16 %v650, %v648
        %v697 = vpack.c.b16 %v653, %v651
        %v698 = vpack.c.b16 %v654, %v652
        %v699 = vpack.c.b16 %v657, %v655
        %v700 = vpack.c.b16 %v658, %v656
        %v701 = vpack.c.b16 %v661, %v659
        %v702 = vpack.c.b16 %v662, %v660
        %v703 = vpack.c.b16 %v665, %v663
        %v704 = vpack.c.b16 %v666, %v664
        %v705 = vpack.c.b16 %v669, %v667
        %v706 = vpack.c.b16 %v670, %v668
        %v707 = vpack.c.b16 %v673, %v671
        %v708 = vpack.c.b16 %v674, %v672
        %v709 = vpack.c.b16 %v677, %v675
        %v710 = vpack.c.b16 %v678, %v676
        %743 = vmatprep.subr.bf16.mxu0 %v680
        %744 = vmatpush1.bf16.msra.mxu0 %v679
        %745 = vmatprep.subr.bf16.mxu0 %v682
        %746 = vmatpush1.bf16.msra.mxu0 %v681
        %747 = vmatprep.subr.bf16.mxu0 %v684
        %748 = vmatpush1.bf16.msra.mxu0 %v683
        %749 = vmatprep.subr.bf16.mxu0 %v686
        %750 = vmatpush1.bf16.msra.mxu0 %v685
        %751 = vmatprep.subr.bf16.mxu0 %v688
        %752 = vmatpush1.bf16.msra.mxu0 %v687
        %753 = vmatprep.subr.bf16.mxu0 %v690
        %754 = vmatpush1.bf16.msra.mxu0 %v689
        %755 = vmatprep.subr.bf16.mxu0 %v692
        %756 = vmatpush1.bf16.msra.mxu0 %v691
        %757 = vmatprep.subr.bf16.mxu0 %v694
        %758 = vmatpush1.bf16.msra.mxu0 %v693
        %759 = vmatprep.subr.bf16.mxu0 %v696
        %760 = vmatpush1.bf16.msra.mxu0 %v695
        %761 = vmatprep.subr.bf16.mxu0 %v698
        %762 = vmatpush1.bf16.msra.mxu0 %v697
        %763 = vmatprep.subr.bf16.mxu0 %v700
        %764 = vmatpush1.bf16.msra.mxu0 %v699
        %765 = vmatprep.subr.bf16.mxu0 %v702
        %766 = vmatpush1.bf16.msra.mxu0 %v701
        %767 = vmatprep.subr.bf16.mxu0 %v704
        %768 = vmatpush1.bf16.msra.mxu0 %v703
        %769 = vmatprep.subr.bf16.mxu0 %v706
        %770 = vmatpush1.bf16.msra.mxu0 %v705
        %771 = vmatprep.subr.bf16.mxu0 %v708
        %772 = vmatpush1.bf16.msra.mxu0 %v707
        %773 = vmatprep.subr.bf16.mxu0 %v710
        %774 = vmatpush1.bf16.msra.mxu0 %v709
        %775 = vmatprep.mubr.bf16.mxu0 %v290
        %776 = vmatmul.mubr.bf16.gmra.mrb[0].mxu0 %v289
        %v777 = vpop.f32.mrb[0].mxu0
        %v778 = vadd.f32 %v576, %v777
        %v779 = vpop.f32.mrb[0].mxu0
        %v780 = vadd.f32 %v580, %v779
        %v781 = vpop.f32.mrb[0].mxu0
        %v782 = vadd.f32 %v576, %v781
        %v783 = vpop.f32.mrb[0].mxu0
        %v784 = vadd.f32 %v580, %v783
        %785 = vdwg.mxu0
        %v786 = vcombine.high %v530, 0.0
        %v788 = vunpack.c.l.s4 1983009808
        %v789 = vunpack.c.0.s8 %v788
        %v790 = vlaneseq
        %v791 = vshrl.u32 %v790, 7
        %v792 = vsub.s32 %v789, %v791
        %v793 = vrot.slane %v530, %v792
        %v795 = vunpack.c.l.s4 1983009808
        %v796 = vunpack.c.0.s8 %v795
        %v797 = vlaneseq
        %v798 = vshrl.u32 %v797, 7
        %v799 = vsub.s32 %v796, %v798
        %v800 = vrot.slane %v786, %v799
        %v801 = vcombine.high %v532, 0.0
        %v803 = vunpack.c.l.s4 1983009808
        %v804 = vunpack.c.0.s8 %v803
        %v805 = vlaneseq
        %v806 = vshrl.u32 %v805, 7
        %v807 = vsub.s32 %v804, %v806
        %v808 = vrot.slane %v532, %v807
        %v810 = vunpack.c.l.s4 1983009808
        %v811 = vunpack.c.0.s8 %v810
        %v812 = vlaneseq
        %v813 = vshrl.u32 %v812, 7
        %v814 = vsub.s32 %v811, %v813
        %v815 = vrot.slane %v801, %v814
        %v816 = vcombine.low %v793, %v808
        %v817 = vcombine.high %v793, %v808
        %v819 = vunpack.c.l.s4 1934713408
        %v820 = vunpack.c.0.s8 %v819
        %v821 = vlaneseq
        %v822 = vshrl.u32 %v821, 7
        %v823 = vsub.s32 %v820, %v822
        %v824 = vrot.slane %v816, %v823
        %v826 = vunpack.c.l.s4 1934713408
        %v827 = vunpack.c.0.s8 %v826
        %v828 = vlaneseq
        %v829 = vshrl.u32 %v828, 7
        %v830 = vsub.s32 %v827, %v829
        %v831 = vrot.slane %v817, %v830
        %v832 = vcombine.low %v800, %v815
        %v833 = vcombine.high %v800, %v815
        %v835 = vunpack.c.l.s4 1934713408
        %v836 = vunpack.c.0.s8 %v835
        %v837 = vlaneseq
        %v838 = vshrl.u32 %v837, 7
        %v839 = vsub.s32 %v836, %v838
        %v840 = vrot.slane %v832, %v839
        %v842 = vunpack.c.l.s4 1934713408
        %v843 = vunpack.c.0.s8 %v842
        %v844 = vlaneseq
        %v845 = vshrl.u32 %v844, 7
        %v846 = vsub.s32 %v843, %v845
        %v847 = vrot.slane %v833, %v846
        %v848 = vcombine.high %v824, 0.0
        %v849 = vcombine.high %v831, 0.0
        %v850 = vcombine.high %v840, 0.0
        %v851 = vcombine.high %v847, 0.0
        %v852 = vcombine.high %v534, 0.0
        %v854 = vunpack.c.l.s4 1983009808
        %v855 = vunpack.c.0.s8 %v854
        %v856 = vlaneseq
        %v857 = vshrl.u32 %v856, 7
        %v858 = vsub.s32 %v855, %v857
        %v859 = vrot.slane %v534, %v858
        %v861 = vunpack.c.l.s4 1983009808
        %v862 = vunpack.c.0.s8 %v861
        %v863 = vlaneseq
        %v864 = vshrl.u32 %v863, 7
        %v865 = vsub.s32 %v862, %v864
        %v866 = vrot.slane %v852, %v865
        %v867 = vcombine.high %v536, 0.0
        %v869 = vunpack.c.l.s4 1983009808
        %v870 = vunpack.c.0.s8 %v869
        %v871 = vlaneseq
        %v872 = vshrl.u32 %v871, 7
        %v873 = vsub.s32 %v870, %v872
        %v874 = vrot.slane %v536, %v873
        %v876 = vunpack.c.l.s4 1983009808
        %v877 = vunpack.c.0.s8 %v876
        %v878 = vlaneseq
        %v879 = vshrl.u32 %v878, 7
        %v880 = vsub.s32 %v877, %v879
        %v881 = vrot.slane %v867, %v880
        %v882 = vcombine.low %v859, %v874
        %v883 = vcombine.high %v859, %v874
        %v885 = vunpack.c.l.s4 1934713408
        %v886 = vunpack.c.0.s8 %v885
        %v887 = vlaneseq
        %v888 = vshrl.u32 %v887, 7
        %v889 = vsub.s32 %v886, %v888
        %v890 = vrot.slane %v882, %v889
        %v892 = vunpack.c.l.s4 1934713408
        %v893 = vunpack.c.0.s8 %v892
        %v894 = vlaneseq
        %v895 = vshrl.u32 %v894, 7
        %v896 = vsub.s32 %v893, %v895
        %v897 = vrot.slane %v883, %v896
        %v898 = vcombine.low %v866, %v881
        %v899 = vcombine.high %v866, %v881
        %v901 = vunpack.c.l.s4 1934713408
        %v902 = vunpack.c.0.s8 %v901
        %v903 = vlaneseq
        %v904 = vshrl.u32 %v903, 7
        %v905 = vsub.s32 %v902, %v904
        %v906 = vrot.slane %v898, %v905
        %v908 = vunpack.c.l.s4 1934713408
        %v909 = vunpack.c.0.s8 %v908
        %v910 = vlaneseq
        %v911 = vshrl.u32 %v910, 7
        %v912 = vsub.s32 %v909, %v911
        %v913 = vrot.slane %v899, %v912
        %v914 = vcombine.high %v890, 0.0
        %v915 = vcombine.high %v897, 0.0
        %v916 = vcombine.high %v906, 0.0
        %v917 = vcombine.high %v913, 0.0
        %v918 = vcombine.low %v824, %v831
        %v920 = vunpack.c.l.s4 1983009808
        %v921 = vunpack.c.0.s8 %v920
        %v922 = vlaneseq
        %v923 = vshrl.u32 %v922, 7
        %v924 = vsub.s32 %v921, %v923
        %v925 = vrot.slane %v918, %v924
        %v926 = vcombine.low %v848, %v849
        %v928 = vunpack.c.l.s4 1983009808
        %v929 = vunpack.c.0.s8 %v928
        %v930 = vlaneseq
        %v931 = vshrl.u32 %v930, 7
        %v932 = vsub.s32 %v929, %v931
        %v933 = vrot.slane %v926, %v932
        %v934 = vcombine.low %v840, %v847
        %v936 = vunpack.c.l.s4 1983009808
        %v937 = vunpack.c.0.s8 %v936
        %v938 = vlaneseq
        %v939 = vshrl.u32 %v938, 7
        %v940 = vsub.s32 %v937, %v939
        %v941 = vrot.slane %v934, %v940
        %v942 = vcombine.low %v850, %v851
        %v944 = vunpack.c.l.s4 1983009808
        %v945 = vunpack.c.0.s8 %v944
        %v946 = vlaneseq
        %v947 = vshrl.u32 %v946, 7
        %v948 = vsub.s32 %v945, %v947
        %v949 = vrot.slane %v942, %v948
        %v950 = vcombine.low %v925, %v933
        %v952 = vunpack.c.l.s4 1934713408
        %v953 = vunpack.c.0.s8 %v952
        %v954 = vlaneseq
        %v955 = vshrl.u32 %v954, 7
        %v956 = vsub.s32 %v953, %v955
        %v957 = vrot.slane %v950, %v956
        %v958 = vcombine.low %v941, %v949
        %v960 = vunpack.c.l.s4 1934713408
        %v961 = vunpack.c.0.s8 %v960
        %v962 = vlaneseq
        %v963 = vshrl.u32 %v962, 7
        %v964 = vsub.s32 %v961, %v963
        %v965 = vrot.slane %v958, %v964
        %v966 = vcombine.low %v957, %v965
        %v967 = vcombine.high %v957, %v965
        %v968 = vcombine.low %v890, %v897
        %v970 = vunpack.c.l.s4 1983009808
        %v971 = vunpack.c.0.s8 %v970
        %v972 = vlaneseq
        %v973 = vshrl.u32 %v972, 7
        %v974 = vsub.s32 %v971, %v973
        %v975 = vrot.slane %v968, %v974
        %v976 = vcombine.low %v914, %v915
        %v978 = vunpack.c.l.s4 1983009808
        %v979 = vunpack.c.0.s8 %v978
        %v980 = vlaneseq
        %v981 = vshrl.u32 %v980, 7
        %v982 = vsub.s32 %v979, %v981
        %v983 = vrot.slane %v976, %v982
        %v984 = vcombine.low %v906, %v913
        %v986 = vunpack.c.l.s4 1983009808
        %v987 = vunpack.c.0.s8 %v986
        %v988 = vlaneseq
        %v989 = vshrl.u32 %v988, 7
        %v990 = vsub.s32 %v987, %v989
        %v991 = vrot.slane %v984, %v990
        %v992 = vcombine.low %v916, %v917
        %v994 = vunpack.c.l.s4 1983009808
        %v995 = vunpack.c.0.s8 %v994
        %v996 = vlaneseq
        %v997 = vshrl.u32 %v996, 7
        %v998 = vsub.s32 %v995, %v997
        %v999 = vrot.slane %v992, %v998
        %v1000 = vcombine.low %v975, %v983
        %v1002 = vunpack.c.l.s4 1934713408
        %v1003 = vunpack.c.0.s8 %v1002
        %v1004 = vlaneseq
        %v1005 = vshrl.u32 %v1004, 7
        %v1006 = vsub.s32 %v1003, %v1005
        %v1007 = vrot.slane %v1000, %v1006
        %v1008 = vcombine.low %v991, %v999
        %v1010 = vunpack.c.l.s4 1934713408
        %v1011 = vunpack.c.0.s8 %v1010
        %v1012 = vlaneseq
        %v1013 = vshrl.u32 %v1012, 7
        %v1014 = vsub.s32 %v1011, %v1013
        %v1015 = vrot.slane %v1008, %v1014
        %v1016 = vcombine.low %v1007, %v1015
        %v1017 = vcombine.high %v1007, %v1015
        %v1018 = vcombine.high %v778, 0.0
        %v1020 = vunpack.c.l.s4 1983009808
        %v1021 = vunpack.c.0.s8 %v1020
        %v1022 = vlaneseq
        %v1023 = vshrl.u32 %v1022, 7
        %v1024 = vsub.s32 %v1021, %v1023
        %v1025 = vrot.slane %v778, %v1024
        %v1027 = vunpack.c.l.s4 1983009808
        %v1028 = vunpack.c.0.s8 %v1027
        %v1029 = vlaneseq
        %v1030 = vshrl.u32 %v1029, 7
        %v1031 = vsub.s32 %v1028, %v1030
        %v1032 = vrot.slane %v1018, %v1031
        %v1033 = vcombine.high %v780, 0.0
        %v1035 = vunpack.c.l.s4 1983009808
        %v1036 = vunpack.c.0.s8 %v1035
        %v1037 = vlaneseq
        %v1038 = vshrl.u32 %v1037, 7
        %v1039 = vsub.s32 %v1036, %v1038
        %v1040 = vrot.slane %v780, %v1039
        %v1042 = vunpack.c.l.s4 1983009808
        %v1043 = vunpack.c.0.s8 %v1042
        %v1044 = vlaneseq
        %v1045 = vshrl.u32 %v1044, 7
        %v1046 = vsub.s32 %v1043, %v1045
        %v1047 = vrot.slane %v1033, %v1046
        %v1048 = vcombine.low %v1025, %v1040
        %v1049 = vcombine.high %v1025, %v1040
        %v1051 = vunpack.c.l.s4 1934713408
        %v1052 = vunpack.c.0.s8 %v1051
        %v1053 = vlaneseq
        %v1054 = vshrl.u32 %v1053, 7
        %v1055 = vsub.s32 %v1052, %v1054
        %v1056 = vrot.slane %v1048, %v1055
        %v1058 = vunpack.c.l.s4 1934713408
        %v1059 = vunpack.c.0.s8 %v1058
        %v1060 = vlaneseq
        %v1061 = vshrl.u32 %v1060, 7
        %v1062 = vsub.s32 %v1059, %v1061
        %v1063 = vrot.slane %v1049, %v1062
        %v1064 = vcombine.low %v1032, %v1047
        %v1065 = vcombine.high %v1032, %v1047
        %v1067 = vunpack.c.l.s4 1934713408
        %v1068 = vunpack.c.0.s8 %v1067
        %v1069 = vlaneseq
        %v1070 = vshrl.u32 %v1069, 7
        %v1071 = vsub.s32 %v1068, %v1070
        %v1072 = vrot.slane %v1064, %v1071
        %v1074 = vunpack.c.l.s4 1934713408
        %v1075 = vunpack.c.0.s8 %v1074
        %v1076 = vlaneseq
        %v1077 = vshrl.u32 %v1076, 7
        %v1078 = vsub.s32 %v1075, %v1077
        %v1079 = vrot.slane %v1065, %v1078
        %v1080 = vcombine.high %v1056, 0.0
        %v1081 = vcombine.high %v1063, 0.0
        %v1082 = vcombine.high %v1072, 0.0
        %v1083 = vcombine.high %v1079, 0.0
        %v1084 = vcombine.high %v782, 0.0
        %v1086 = vunpack.c.l.s4 1983009808
        %v1087 = vunpack.c.0.s8 %v1086
        %v1088 = vlaneseq
        %v1089 = vshrl.u32 %v1088, 7
        %v1090 = vsub.s32 %v1087, %v1089
        %v1091 = vrot.slane %v782, %v1090
        %v1093 = vunpack.c.l.s4 1983009808
        %v1094 = vunpack.c.0.s8 %v1093
        %v1095 = vlaneseq
        %v1096 = vshrl.u32 %v1095, 7
        %v1097 = vsub.s32 %v1094, %v1096
        %v1098 = vrot.slane %v1084, %v1097
        %v1099 = vcombine.high %v784, 0.0
        %v1101 = vunpack.c.l.s4 1983009808
        %v1102 = vunpack.c.0.s8 %v1101
        %v1103 = vlaneseq
        %v1104 = vshrl.u32 %v1103, 7
        %v1105 = vsub.s32 %v1102, %v1104
        %v1106 = vrot.slane %v784, %v1105
        %v1108 = vunpack.c.l.s4 1983009808
        %v1109 = vunpack.c.0.s8 %v1108
        %v1110 = vlaneseq
        %v1111 = vshrl.u32 %v1110, 7
        %v1112 = vsub.s32 %v1109, %v1111
        %v1113 = vrot.slane %v1099, %v1112
        %v1114 = vcombine.low %v1091, %v1106
        %v1115 = vcombine.high %v1091, %v1106
        %v1117 = vunpack.c.l.s4 1934713408
        %v1118 = vunpack.c.0.s8 %v1117
        %v1119 = vlaneseq
        %v1120 = vshrl.u32 %v1119, 7
        %v1121 = vsub.s32 %v1118, %v1120
        %v1122 = vrot.slane %v1114, %v1121
        %v1124 = vunpack.c.l.s4 1934713408
        %v1125 = vunpack.c.0.s8 %v1124
        %v1126 = vlaneseq
        %v1127 = vshrl.u32 %v1126, 7
        %v1128 = vsub.s32 %v1125, %v1127
        %v1129 = vrot.slane %v1115, %v1128
        %v1130 = vcombine.low %v1098, %v1113
        %v1131 = vcombine.high %v1098, %v1113
        %v1133 = vunpack.c.l.s4 1934713408
        %v1134 = vunpack.c.0.s8 %v1133
        %v1135 = vlaneseq
        %v1136 = vshrl.u32 %v1135, 7
        %v1137 = vsub.s32 %v1134, %v1136
        %v1138 = vrot.slane %v1130, %v1137
        %v1140 = vunpack.c.l.s4 1934713408
        %v1141 = vunpack.c.0.s8 %v1140
        %v1142 = vlaneseq
        %v1143 = vshrl.u32 %v1142, 7
        %v1144 = vsub.s32 %v1141, %v1143
        %v1145 = vrot.slane %v1131, %v1144
        %v1146 = vcombine.high %v1122, 0.0
        %v1147 = vcombine.high %v1129, 0.0
        %v1148 = vcombine.high %v1138, 0.0
        %v1149 = vcombine.high %v1145, 0.0
        %v1150 = vcombine.low %v1056, %v1063
        %v1152 = vunpack.c.l.s4 1983009808
        %v1153 = vunpack.c.0.s8 %v1152
        %v1154 = vlaneseq
        %v1155 = vshrl.u32 %v1154, 7
        %v1156 = vsub.s32 %v1153, %v1155
        %v1157 = vrot.slane %v1150, %v1156
        %v1158 = vcombine.low %v1080, %v1081
        %v1160 = vunpack.c.l.s4 1983009808
        %v1161 = vunpack.c.0.s8 %v1160
        %v1162 = vlaneseq
        %v1163 = vshrl.u32 %v1162, 7
        %v1164 = vsub.s32 %v1161, %v1163
        %v1165 = vrot.slane %v1158, %v1164
        %v1166 = vcombine.low %v1072, %v1079
        %v1168 = vunpack.c.l.s4 1983009808
        %v1169 = vunpack.c.0.s8 %v1168
        %v1170 = vlaneseq
        %v1171 = vshrl.u32 %v1170, 7
        %v1172 = vsub.s32 %v1169, %v1171
        %v1173 = vrot.slane %v1166, %v1172
        %v1174 = vcombine.low %v1082, %v1083
        %v1176 = vunpack.c.l.s4 1983009808
        %v1177 = vunpack.c.0.s8 %v1176
        %v1178 = vlaneseq
        %v1179 = vshrl.u32 %v1178, 7
        %v1180 = vsub.s32 %v1177, %v1179
        %v1181 = vrot.slane %v1174, %v1180
        %v1182 = vcombine.low %v1157, %v1165
        %v1184 = vunpack.c.l.s4 1934713408
        %v1185 = vunpack.c.0.s8 %v1184
        %v1186 = vlaneseq
        %v1187 = vshrl.u32 %v1186, 7
        %v1188 = vsub.s32 %v1185, %v1187
        %v1189 = vrot.slane %v1182, %v1188
        %v1190 = vcombine.low %v1173, %v1181
        %v1192 = vunpack.c.l.s4 1934713408
        %v1193 = vunpack.c.0.s8 %v1192
        %v1194 = vlaneseq
        %v1195 = vshrl.u32 %v1194, 7
        %v1196 = vsub.s32 %v1193, %v1195
        %v1197 = vrot.slane %v1190, %v1196
        %v1198 = vcombine.low %v1189, %v1197
        %v1199 = vcombine.high %v1189, %v1197
        %v1200 = vcombine.low %v1122, %v1129
        %v1202 = vunpack.c.l.s4 1983009808
        %v1203 = vunpack.c.0.s8 %v1202
        %v1204 = vlaneseq
        %v1205 = vshrl.u32 %v1204, 7
        %v1206 = vsub.s32 %v1203, %v1205
        %v1207 = vrot.slane %v1200, %v1206
        %v1208 = vcombine.low %v1146, %v1147
        %v1210 = vunpack.c.l.s4 1983009808
        %v1211 = vunpack.c.0.s8 %v1210
        %v1212 = vlaneseq
        %v1213 = vshrl.u32 %v1212, 7
        %v1214 = vsub.s32 %v1211, %v1213
        %v1215 = vrot.slane %v1208, %v1214
        %v1216 = vcombine.low %v1138, %v1145
        %v1218 = vunpack.c.l.s4 1983009808
        %v1219 = vunpack.c.0.s8 %v1218
        %v1220 = vlaneseq
        %v1221 = vshrl.u32 %v1220, 7
        %v1222 = vsub.s32 %v1219, %v1221
        %v1223 = vrot.slane %v1216, %v1222
        %v1224 = vcombine.low %v1148, %v1149
        %v1226 = vunpack.c.l.s4 1983009808
        %v1227 = vunpack.c.0.s8 %v1226
        %v1228 = vlaneseq
        %v1229 = vshrl.u32 %v1228, 7
        %v1230 = vsub.s32 %v1227, %v1229
        %v1231 = vrot.slane %v1224, %v1230
        %v1232 = vcombine.low %v1207, %v1215
        %v1234 = vunpack.c.l.s4 1934713408
        %v1235 = vunpack.c.0.s8 %v1234
        %v1236 = vlaneseq
        %v1237 = vshrl.u32 %v1236, 7
        %v1238 = vsub.s32 %v1235, %v1237
        %v1239 = vrot.slane %v1232, %v1238
        %v1240 = vcombine.low %v1223, %v1231
        %v1242 = vunpack.c.l.s4 1934713408
        %v1243 = vunpack.c.0.s8 %v1242
        %v1244 = vlaneseq
        %v1245 = vshrl.u32 %v1244, 7
        %v1246 = vsub.s32 %v1243, %v1245
        %v1247 = vrot.slane %v1240, %v1246
        %v1248 = vcombine.low %v1239, %v1247
        %v1249 = vcombine.high %v1239, %v1247
        %1250 = vxpose.xlu0.b32.start [1/16] %v966, 128
        %1251 = vxpose.xlu0.b32.cont [2/16] %v1016, 128
        %1252 = vxpose.xlu0.b32.cont [3/16] 0.0, 128
        %1253 = vxpose.xlu0.b32.cont [4/16] 0.0, 128
        %1254 = vxpose.xlu0.b32.cont [5/16] 0.0, 128
        %1255 = vxpose.xlu0.b32.cont [6/16] 0.0, 128
        %1256 = vxpose.xlu0.b32.cont [7/16] 0.0, 128
        %1257 = vxpose.xlu0.b32.cont [8/16] 0.0, 128
        %1258 = vxpose.xlu0.b32.cont [9/16] 0.0, 128
        %1259 = vxpose.xlu0.b32.cont [10/16] 0.0, 128
        %1260 = vxpose.xlu0.b32.cont [11/16] 0.0, 128
        %1261 = vxpose.xlu0.b32.cont [12/16] 0.0, 128
        %1262 = vxpose.xlu0.b32.cont [13/16] 0.0, 128
        %1263 = vxpose.xlu0.b32.cont [14/16] 0.0, 128
        %1264 = vxpose.xlu0.b32.cont [15/16] 0.0, 128
        %1265 = vxpose.xlu0.b32.end [16/16] 0.0, 128
        %v1266 = vpop.trf.xlu0
        %v1267 = vpop.trf.xlu0
        %v1268 = vpop.trf.xlu0
        %v1269 = vpop.trf.xlu0
        %v1270 = vpop.trf.xlu0
        %v1271 = vpop.trf.xlu0
        %v1272 = vpop.trf.xlu0
        %v1273 = vpop.trf.xlu0
        %v1274 = vpop.trf.xlu0
        %v1275 = vpop.trf.xlu0
        %v1276 = vpop.trf.xlu0
        %v1277 = vpop.trf.xlu0
        %v1278 = vpop.trf.xlu0
        %v1279 = vpop.trf.xlu0
        %v1280 = vpop.trf.xlu0
        %v1281 = vpop.trf.xlu0
        %1282 = vxpose.xlu0.b32.start [1/16] %v967, 128
        %1283 = vxpose.xlu0.b32.cont [2/16] %v1017, 128
        %1284 = vxpose.xlu0.b32.cont [3/16] 0.0, 128
        %1285 = vxpose.xlu0.b32.cont [4/16] 0.0, 128
        %1286 = vxpose.xlu0.b32.cont [5/16] 0.0, 128
        %1287 = vxpose.xlu0.b32.cont [6/16] 0.0, 128
        %1288 = vxpose.xlu0.b32.cont [7/16] 0.0, 128
        %1289 = vxpose.xlu0.b32.cont [8/16] 0.0, 128
        %1290 = vxpose.xlu0.b32.cont [9/16] 0.0, 128
        %1291 = vxpose.xlu0.b32.cont [10/16] 0.0, 128
        %1292 = vxpose.xlu0.b32.cont [11/16] 0.0, 128
        %1293 = vxpose.xlu0.b32.cont [12/16] 0.0, 128
        %1294 = vxpose.xlu0.b32.cont [13/16] 0.0, 128
        %1295 = vxpose.xlu0.b32.cont [14/16] 0.0, 128
        %1296 = vxpose.xlu0.b32.cont [15/16] 0.0, 128
        %1297 = vxpose.xlu0.b32.end [16/16] 0.0, 128
        %v1298 = vpop.trf.xlu0
        %v1299 = vpop.trf.xlu0
        %v1300 = vpop.trf.xlu0
        %v1301 = vpop.trf.xlu0
        %v1302 = vpop.trf.xlu0
        %v1303 = vpop.trf.xlu0
        %v1304 = vpop.trf.xlu0
        %v1305 = vpop.trf.xlu0
        %v1306 = vpop.trf.xlu0
        %v1307 = vpop.trf.xlu0
        %v1308 = vpop.trf.xlu0
        %v1309 = vpop.trf.xlu0
        %v1310 = vpop.trf.xlu0
        %v1311 = vpop.trf.xlu0
        %v1312 = vpop.trf.xlu0
        %v1313 = vpop.trf.xlu0
        %v1314 = vpack.c.bf16 %v1267, %v1266
        %v1315 = vpack.c.bf16 %v1269, %v1268
        %v1316 = vpack.c.bf16 %v1271, %v1270
        %v1317 = vpack.c.bf16 %v1273, %v1272
        %v1318 = vpack.c.bf16 %v1275, %v1274
        %v1319 = vpack.c.bf16 %v1277, %v1276
        %v1320 = vpack.c.bf16 %v1279, %v1278
        %v1321 = vpack.c.bf16 %v1281, %v1280
        %v1322 = vpack.c.bf16 %v1299, %v1298
        %v1323 = vpack.c.bf16 %v1301, %v1300
        %v1324 = vpack.c.bf16 %v1303, %v1302
        %v1325 = vpack.c.bf16 %v1305, %v1304
        %v1326 = vpack.c.bf16 %v1307, %v1306
        %v1327 = vpack.c.bf16 %v1309, %v1308
        %v1328 = vpack.c.bf16 %v1311, %v1310
        %v1329 = vpack.c.bf16 %v1313, %v1312
        %v1346 = vunpack.c.l.b16 %v1314
        %v1347 = vunpack.c.h.b16 %v1314
        %v1348 = vunpack.c.l.b16 %v1315
        %v1349 = vunpack.c.h.b16 %v1315
        %v1350 = vunpack.c.l.b16 %v1316
        %v1351 = vunpack.c.h.b16 %v1316
        %v1352 = vunpack.c.l.b16 %v1317
        %v1353 = vunpack.c.h.b16 %v1317
        %v1354 = vunpack.c.l.b16 %v1318
        %v1355 = vunpack.c.h.b16 %v1318
        %v1356 = vunpack.c.l.b16 %v1319
        %v1357 = vunpack.c.h.b16 %v1319
        %v1358 = vunpack.c.l.b16 %v1320
        %v1359 = vunpack.c.h.b16 %v1320
        %v1360 = vunpack.c.l.b16 %v1321
        %v1361 = vunpack.c.h.b16 %v1321
        %v1362 = vunpack.c.l.b16 %v1322
        %v1363 = vunpack.c.h.b16 %v1322
        %v1364 = vunpack.c.l.b16 %v1323
        %v1365 = vunpack.c.h.b16 %v1323
        %v1366 = vunpack.c.l.b16 %v1324
        %v1367 = vunpack.c.h.b16 %v1324
        %v1368 = vunpack.c.l.b16 %v1325
        %v1369 = vunpack.c.h.b16 %v1325
        %v1370 = vunpack.c.l.b16 %v1326
        %v1371 = vunpack.c.h.b16 %v1326
        %v1372 = vunpack.c.l.b16 %v1327
        %v1373 = vunpack.c.h.b16 %v1327
        %v1374 = vunpack.c.l.b16 %v1328
        %v1375 = vunpack.c.h.b16 %v1328
        %v1376 = vunpack.c.l.b16 %v1329
        %v1377 = vunpack.c.h.b16 %v1329
        %v1378 = vpack.c.b16 %v1346, %v1346
        %v1379 = vpack.c.b16 %v1347, %v1347
        %v1380 = vpack.c.b16 %v1348, %v1348
        %v1381 = vpack.c.b16 %v1349, %v1349
        %v1382 = vpack.c.b16 %v1350, %v1350
        %v1383 = vpack.c.b16 %v1351, %v1351
        %v1384 = vpack.c.b16 %v1352, %v1352
        %v1385 = vpack.c.b16 %v1353, %v1353
        %v1386 = vpack.c.b16 %v1354, %v1354
        %v1387 = vpack.c.b16 %v1355, %v1355
        %v1388 = vpack.c.b16 %v1356, %v1356
        %v1389 = vpack.c.b16 %v1357, %v1357
        %v1390 = vpack.c.b16 %v1358, %v1358
        %v1391 = vpack.c.b16 %v1359, %v1359
        %v1392 = vpack.c.b16 %v1360, %v1360
        %v1393 = vpack.c.b16 %v1361, %v1361
        %v1394 = vpack.c.b16 %v1362, %v1362
        %v1395 = vpack.c.b16 %v1363, %v1363
        %v1396 = vpack.c.b16 %v1364, %v1364
        %v1397 = vpack.c.b16 %v1365, %v1365
        %v1398 = vpack.c.b16 %v1366, %v1366
        %v1399 = vpack.c.b16 %v1367, %v1367
        %v1400 = vpack.c.b16 %v1368, %v1368
        %v1401 = vpack.c.b16 %v1369, %v1369
        %v1402 = vpack.c.b16 %v1370, %v1370
        %v1403 = vpack.c.b16 %v1371, %v1371
        %v1404 = vpack.c.b16 %v1372, %v1372
        %v1405 = vpack.c.b16 %v1373, %v1373
        %v1406 = vpack.c.b16 %v1374, %v1374
        %v1407 = vpack.c.b16 %v1375, %v1375
        %v1408 = vpack.c.b16 %v1376, %v1376
        %v1409 = vpack.c.b16 %v1377, %v1377
        %vm1442 = vcmask 125952
        %1443 = vst.msk [vmem:[%s284] sm:$0xf] %vm1442, %v1378
        %1444 = vst.msk [vmem:[%s284 + $0x4] sm:$0xf] %vm1442, %v1379
        %1445 = vst.msk [vmem:[%s284 + $0x8] sm:$0xf] %vm1442, %v1380
        %1446 = vst.msk [vmem:[%s284 + $0xc] sm:$0xf] %vm1442, %v1381
        %1447 = vst.msk [vmem:[%s284 + $0x10] sm:$0xf] %vm1442, %v1382
        %1448 = vst.msk [vmem:[%s284 + $0x14] sm:$0xf] %vm1442, %v1383
        %1449 = vst.msk [vmem:[%s284 + $0x18] sm:$0xf] %vm1442, %v1384
        %1450 = vst.msk [vmem:[%s284 + $0x1c] sm:$0xf] %vm1442, %v1385
        %1451 = vst.msk [vmem:[%s284 + $0x20] sm:$0xf] %vm1442, %v1386
        %1452 = vst.msk [vmem:[%s284 + $0x24] sm:$0xf] %vm1442, %v1387
        %1453 = vst.msk [vmem:[%s284 + $0x28] sm:$0xf] %vm1442, %v1388
        %1454 = vst.msk [vmem:[%s284 + $0x2c] sm:$0xf] %vm1442, %v1389
        %1455 = vst.msk [vmem:[%s284 + $0x30] sm:$0xf] %vm1442, %v1390
        %1456 = vst.msk [vmem:[%s284 + $0x34] sm:$0xf] %vm1442, %v1391
        %1457 = vst.msk [vmem:[%s284 + $0x38] sm:$0xf] %vm1442, %v1392
        %1458 = vst.msk [vmem:[%s284 + $0x3c] sm:$0xf] %vm1442, %v1393
        %1459 = vst.msk [vmem:[%s284 + $0x40] sm:$0xf] %vm1442, %v1394
        %1460 = vst.msk [vmem:[%s284 + $0x44] sm:$0xf] %vm1442, %v1395
        %1461 = vst.msk [vmem:[%s284 + $0x48] sm:$0xf] %vm1442, %v1396
        %1462 = vst.msk [vmem:[%s284 + $0x4c] sm:$0xf] %vm1442, %v1397
        %1463 = vst.msk [vmem:[%s284 + $0x50] sm:$0xf] %vm1442, %v1398
        %1464 = vst.msk [vmem:[%s284 + $0x54] sm:$0xf] %vm1442, %v1399
        %1465 = vst.msk [vmem:[%s284 + $0x58] sm:$0xf] %vm1442, %v1400
        %1466 = vst.msk [vmem:[%s284 + $0x5c] sm:$0xf] %vm1442, %v1401
        %1467 = vst.msk [vmem:[%s284 + $0x60] sm:$0xf] %vm1442, %v1402
        %1468 = vst.msk [vmem:[%s284 + $0x64] sm:$0xf] %vm1442, %v1403
        %1469 = vst.msk [vmem:[%s284 + $0x68] sm:$0xf] %vm1442, %v1404
        %1470 = vst.msk [vmem:[%s284 + $0x6c] sm:$0xf] %vm1442, %v1405
        %1471 = vst.msk [vmem:[%s284 + $0x70] sm:$0xf] %vm1442, %v1406
        %1472 = vst.msk [vmem:[%s284 + $0x74] sm:$0xf] %vm1442, %v1407
        %1473 = vst.msk [vmem:[%s284 + $0x78] sm:$0xf] %vm1442, %v1408
        %1474 = vst.msk [vmem:[%s284 + $0x7c] sm:$0xf] %vm1442, %v1409
        %v1475 = vpack.c.bf16 %v1248, %v1198
        %v1476 = vpack.c.bf16 %v1249, %v1199
        %v1479 = vunpack.c.l.b16 %v1475
        %v1480 = vunpack.c.h.b16 %v1475
        %v1481 = vunpack.c.l.b16 %v1476
        %v1482 = vunpack.c.h.b16 %v1476
        %v1483 = vpack.c.b16 %v1479, %v1479
        %v1484 = vpack.c.b16 %v1480, %v1480
        %v1485 = vpack.c.b16 %v1481, %v1481
        %v1486 = vpack.c.b16 %v1482, %v1482
        %1491 = vst [vmem:[%s279] sm:$0xf] %v1483
        %1492 = vst [vmem:[%s279 + $0x4] sm:$0xf] %v1484
        %1493 = vst [vmem:[%s279 + $0x8] sm:$0xf] %v1485
        %1494 = vst [vmem:[%s279 + $0xc] sm:$0xf] %v1486
        %p1495 = scmp.lt.s32.totalorder %s24, 1
        %s1496 = scalar_select %p1495, %s24, 1
        %s1497 = smul.addr %s1496, 32
        %s1498 = smul.addr %s1497, 4
        %s1499 = scalar_lea.vmem %s4, %s1498
        %s1500 = sand.u32 %s147, 1
        %s1501 = scalar_lea.sflag [#allocation4], %s1500
        %s1502 = sand.u32 %s147, 1
        %s1503 = smul.addr %s1502, 16
        %s1504 = scalar_lea.vmem [#allocation8], %s1503
        // Predicated region
        $region49: #{tpu_custom_call.1} parent=35 // pred_check
          %p1505 = pneg %p131
        $region50: #{tpu_custom_call.1} parent=35 // pred_check_branch
          %1507 = sbr.rel (%p1505) target = $region52
        $region51: #{tpu_custom_call.1} parent=35 // pred_region
          _
        $region52: #{tpu_custom_call.1} parent=35 // pred_fallthru
          _
        // Predicated region
        $region53: #{tpu_custom_call.1} parent=35 // pred_check
          %p1508 = pneg %p157
        $region54: #{tpu_custom_call.1} parent=35 // pred_check_branch
          %1510 = sbr.rel (%p1508) target = $region56
        $region55: #{tpu_custom_call.1} parent=35 // pred_region
          %s1512 = ssub.s32 256, 256
          %1513 = vsyncadd %s1501, %s1512
          %s1514 = smul.addr %s24, 4
          %s1515 = smul.addr %s1514, 64
          %s1516 = scalar_lea.hbm %s5, %s1515
          %s1517 = sshll.u32 %s1504, 4
          %s1518 = int_to_ptr.vmem [resolvable:$true] %s1517
          %1523 = dma.vmem_to_hbm [thread:$0]  %s1518, 256, %s1516, %s1501, 64, 64, 4
        $region56: #{tpu_custom_call.1} parent=35 // pred_fallthru
          _
      $region36: #{tpu_custom_call.1} parent=5 // pred_fallthru
        _
      %p1524 = scmp.le.s32.totalorder 2, %s19
      // Predicated region
      $region57: #{tpu_custom_call.1} parent=5 // pred_check
        %p1525 = pneg %p1524
      $region58: #{tpu_custom_call.1} parent=5 // pred_check_branch
        %1527 = sbr.rel (%p1525) target = $region60
      $region59: #{tpu_custom_call.1} parent=5 // pred_region
        %s1528 = ssub.s32 %s19, 2
        // Predicated region
        $region61: #{tpu_custom_call.1} parent=59 // pred_check
          %p1529 = pneg %p137
        $region62: #{tpu_custom_call.1} parent=59 // pred_check_branch
          %1531 = sbr.rel (%p1529) target = $region64
        $region63: #{tpu_custom_call.1} parent=59 // pred_region
          %p1532 = scmp.lt.s32.totalorder %s25, 1
          %s1533 = scalar_select %p1532, %s25, 1
          %s1534 = smul.addr %s1533, 32
          %s1535 = smul.addr %s1534, 4
          %s1536 = scalar_lea.vmem %s4, %s1535
        $region64: #{tpu_custom_call.1} parent=59 // pred_fallthru
          _
        // Predicated region
        $region65: #{tpu_custom_call.1} parent=59 // pred_check
          %p1537 = pneg %p163
        $region66: #{tpu_custom_call.1} parent=59 // pred_check_branch
          %1539 = sbr.rel (%p1537) target = $region68
        $region67: #{tpu_custom_call.1} parent=59 // pred_region
          %s1540 = sand.u32 %s148, 1
          %s1541 = scalar_lea.sflag [#allocation4], %s1540
          %s1542 = sand.u32 %s148, 1
          %s1543 = smul.addr %s1542, 16
          %s1544 = scalar_lea.vmem [#allocation8], %s1543
          %1545 = dma.done %s1541, 256
        $region68: #{tpu_custom_call.1} parent=59 // pred_fallthru
          _
      $region60: #{tpu_custom_call.1} parent=5 // pred_fallthru
        _
    $region6: #{tpu_custom_call.1} parent=1 // loop_footer
      %s23 = sadd.s32 1, %s19
    $region7: #{tpu_custom_call.1} parent=1 // loop_footer_branch
      %18 = sbr.rel target = $region3
    $region8: #{tpu_custom_call.1} parent=1 // loop_exit
      _
    %1546 = vsyncpa [#allocation3], 1
    %s1547 = scalar_lea.sflag [#allocation3], 1
    %1548 = vsyncpa %s1547, 1
    %1549 = vsyncpa [#allocation6], 1
    %1550 = vsyncpa [#allocation4], 1
    %s1551 = scalar_lea.sflag [#allocation4], 1
    %1552 = vsyncpa %s1551, 1

// kernel: tpu_custom_call.1
$region0: #{tpu_custom_call.1}
  #allocation0 [shape = 'u32[]', space=smem, size = 0x4, offset = 0x4, fixed_abs, tag = 'smem constant byte address 0x4 - core index']
  #allocation1 [shape = 'u32[144,128]{1,0:T(1,128)}', space=vmem, size = 0x12000, scoped, tag = 'internal scratch']
  %s0 = inlined_call_operand.hbm [shape: f32[2,16,256], index: 0, kind: input, shape index: {}]
  %s1 = inlined_call_operand.hbm [shape: bf16[256,256], index: 1, kind: input, shape index: {}]
  %s2 = inlined_call_operand.hbm [shape: bf16[256,256], index: 2, kind: input, shape index: {}]
  %s3 = inlined_call_operand.vmem [shape: f32[2,256], index: 3, kind: input, shape index: {}]
  %s4 = inlined_call_operand.vmem [shape: bf16[2,2,128,16], index: 4, kind: output, shape index: {0}]
  %s5 = inlined_call_operand.hbm [shape: bf16[2,2,16,128], index: 5, kind: output, shape index: {1}]
  %6 = xla_tuple %s4, %s5
  %s7 = sld [smem:[#allocation0]]
  $region69: #{tpu_custom_call.1} parent=0
    _
  %s9 = ssub.s32 1, %s7
  %s10 = scalar_select 0, %s9, %s7
  $region1: #{tpu_custom_call.1} parent=0
    #allocation2 [shape = 'u8[32768]{0}', space=vmem, size = 0x8000, scoped, tag = 'input window, operand 0']
    #allocation3 [shape = 's32[2]{0}', space=sflag, size = 0x8, scoped, tag = 'scoped memory for tpu_custom_call.1']
    #allocation4 [shape = 's32[2]{0}', space=sflag, size = 0x8, scoped, tag = 'scoped memory for tpu_custom_call.1']
    #allocation5 [shape = 'u8[131072]{0}', space=vmem, size = 0x20000, scoped, tag = 'input window, operand 1, single buffered']
    #allocation6 [shape = 's32[1]{0}', space=sflag, size = 0x4, scoped, tag = 'scoped memory for tpu_custom_call.1']
    #allocation7 [shape = 'u8[131072]{0}', space=vmem, size = 0x20000, scoped, tag = 'input window, operand 2, single buffered']
    #allocation8 [shape = 'u8[16384]{0}', space=vmem, size = 0x4000, scoped, tag = 'output window, operand 1']
    %11 = vsyncpa [#allocation3], 0
    %s12 = scalar_lea.sflag [#allocation3], 1
    %13 = vsyncpa %s12, 0
    %14 = vsyncpa [#allocation6], 0
    %15 = vsyncpa [#allocation4], 0
    %s16 = scalar_lea.sflag [#allocation4], 1
    %17 = vsyncpa %s16, 0
    loop: start=0, step=1, limit=4
    $region2: #{tpu_custom_call.1} parent=1 // loop_pre_header
      _
    $region3: #{tpu_custom_call.1} parent=1 // loop_header
      %s19 = sphi 0, %s23
      %p20 = scmp.ge.s32.totalorder %s19, 4
      %s29 = sphi 0, %s31
      %s32 = sphi 0, %s29
      %s33 = sphi 0, %s32
      %s49 = sphi 0, %s33
      %s53 = sphi 0, %s53
      %s55 = sphi 0, %s53
      %s56 = sphi 0, %s55
      %s70 = sphi 0, %s56
      %s74 = sphi 0, %s74
      %s76 = sphi 0, %s74
      %s77 = sphi 0, %s76
      %s91 = sphi 0, %s77
      %s95 = sphi 0, %s95
      %s97 = sphi 0, %s95
      %s98 = sphi 0, %s97
      %s112 = sphi 0, %s98
      %s118 = sphi 0, %s120
      %s121 = sphi 0, %s118
      %s122 = sphi 0, %s121
      %s138 = sphi 0, %s122
      %s144 = sphi 0, %s146
      %s147 = sphi 0, %s144
      %s148 = sphi 0, %s147
      %s164 = sphi 0, %s148
    $region4: #{tpu_custom_call.1} parent=1 // loop_header_branch
      %22 = sbr.rel (%p20) target = $region8
    $region5: #{tpu_custom_call.1} parent=1 // loop_body
      %s24 = ssub.s32 %s19, 1
      %s25 = ssub.s32 %s19, 2
      %s26 = sadd.s32 %s19, 1
      %s27 = ssub.s32 %s19, %s26
      %p28 = scmp.eq.s32.totalorder %s27, 0
      %s30 = sadd.s32 %s29, 1
      %s31 = scalar_select %p28, %s29, %s30
      %p34 = pneg %p28
      %p35 = scmp.eq.s32.totalorder %s19, 1
      %p36 = por %p34, %p35
      %p37 = scmp.ne.s32.totalorder %s29, %s32
      %p38 = scmp.eq.s32.totalorder %s19, 0
      %p39 = por %p37, %p38
      %p40 = scmp.ne.s32.totalorder %s29, %s32
      %p41 = scmp.eq.s32.totalorder %s24, 1
      %p42 = por %p40, %p41
      %p43 = scmp.ne.s32.totalorder %s32, %s33
      %p44 = scmp.eq.s32.totalorder %s24, 0
      %p45 = por %p43, %p44
      %p46 = scmp.ne.s32.totalorder %s32, %s33
      %p47 = scmp.eq.s32.totalorder %s25, 1
      %p48 = por %p46, %p47
      %p50 = scmp.ne.s32.totalorder %s33, %s49
      %p51 = scmp.eq.s32.totalorder %s25, 0
      %p52 = por %p50, %p51
      %s54 = sadd.s32 %s53, 1
      %p57 = scmp.eq.s32.totalorder %s19, 1
      %p58 = scmp.ne.s32.totalorder %s53, %s55
      %p59 = scmp.eq.s32.totalorder %s19, 0
      %p60 = por %p58, %p59
      %p61 = scmp.ne.s32.totalorder %s53, %s55
      %p62 = scmp.eq.s32.totalorder %s24, 1
      %p63 = por %p61, %p62
      %p64 = scmp.ne.s32.totalorder %s55, %s56
      %p65 = scmp.eq.s32.totalorder %s24, 0
      %p66 = por %p64, %p65
      %p67 = scmp.ne.s32.totalorder %s55, %s56
      %p68 = scmp.eq.s32.totalorder %s25, 1
      %p69 = por %p67, %p68
      %p71 = scmp.ne.s32.totalorder %s56, %s70
      %p72 = scmp.eq.s32.totalorder %s25, 0
      %p73 = por %p71, %p72
      %s75 = sadd.s32 %s74, 1
      %p78 = scmp.eq.s32.totalorder %s19, 1
      %p79 = scmp.ne.s32.totalorder %s74, %s76
      %p80 = scmp.eq.s32.totalorder %s19, 0
      %p81 = por %p79, %p80
      %p82 = scmp.ne.s32.totalorder %s74, %s76
      %p83 = scmp.eq.s32.totalorder %s24, 1
      %p84 = por %p82, %p83
      %p85 = scmp.ne.s32.totalorder %s76, %s77
      %p86 = scmp.eq.s32.totalorder %s24, 0
      %p87 = por %p85, %p86
      %p88 = scmp.ne.s32.totalorder %s76, %s77
      %p89 = scmp.eq.s32.totalorder %s25, 1
      %p90 = por %p88, %p89
      %p92 = scmp.ne.s32.totalorder %s77, %s91
      %p93 = scmp.eq.s32.totalorder %s25, 0
      %p94 = por %p92, %p93
      %s96 = sadd.s32 %s95, 1
      %p99 = scmp.eq.s32.totalorder %s19, 1
      %p100 = scmp.ne.s32.totalorder %s95, %s97
      %p101 = scmp.eq.s32.totalorder %s19, 0
      %p102 = por %p100, %p101
      %p103 = scmp.ne.s32.totalorder %s95, %s97
      %p104 = scmp.eq.s32.totalorder %s24, 1
      %p105 = por %p103, %p104
      %p106 = scmp.ne.s32.totalorder %s97, %s98
      %p107 = scmp.eq.s32.totalorder %s24, 0
      %p108 = por %p106, %p107
      %p109 = scmp.ne.s32.totalorder %s97, %s98
      %p110 = scmp.eq.s32.totalorder %s25, 1
      %p111 = por %p109, %p110
      %p113 = scmp.ne.s32.totalorder %s98, %s112
      %p114 = scmp.eq.s32.totalorder %s25, 0
      %p115 = por %p113, %p114
      %s116 = ssub.s32 %s19, %s26
      %p117 = scmp.eq.s32.totalorder %s116, 0
      %s119 = sadd.s32 %s118, 1
      %s120 = scalar_select %p117, %s118, %s119
      %p123 = pneg %p117
      %p124 = scmp.eq.s32.totalorder %s19, 1
      %p125 = por %p123, %p124
      %p126 = scmp.ne.s32.totalorder %s118, %s121
      %p127 = scmp.eq.s32.totalorder %s19, 0
      %p128 = por %p126, %p127
      %p129 = scmp.ne.s32.totalorder %s118, %s121
      %p130 = scmp.eq.s32.totalorder %s24, 1
      %p131 = por %p129, %p130
      %p132 = scmp.ne.s32.totalorder %s121, %s122
      %p133 = scmp.eq.s32.totalorder %s24, 0
      %p134 = por %p132, %p133
      %p135 = scmp.ne.s32.totalorder %s121, %s122
      %p136 = scmp.eq.s32.totalorder %s25, 1
      %p137 = por %p135, %p136
      %p139 = scmp.ne.s32.totalorder %s122, %s138
      %p140 = scmp.eq.s32.totalorder %s25, 0
      %p141 = por %p139, %p140
      %s142 = ssub.s32 %s19, %s26
      %p143 = scmp.eq.s32.totalorder %s142, 0
      %s145 = sadd.s32 %s144, 1
      %s146 = scalar_select %p143, %s144, %s145
      %p149 = pneg %p143
      %p150 = scmp.eq.s32.totalorder %s19, 1
      %p151 = por %p149, %p150
      %p152 = scmp.ne.s32.totalorder %s144, %s147
      %p153 = scmp.eq.s32.totalorder %s19, 0
      %p154 = por %p152, %p153
      %p155 = scmp.ne.s32.totalorder %s144, %s147
      %p156 = scmp.eq.s32.totalorder %s24, 1
      %p157 = por %p155, %p156
      %p158 = scmp.ne.s32.totalorder %s147, %s148
      %p159 = scmp.eq.s32.totalorder %s24, 0
      %p160 = por %p158, %p159
      %p161 = scmp.ne.s32.totalorder %s147, %s148
      %p162 = scmp.eq.s32.totalorder %s25, 1
      %p163 = por %p161, %p162
      %p165 = scmp.ne.s32.totalorder %s148, %s164
      %p166 = scmp.eq.s32.totalorder %s25, 0
      %p167 = por %p165, %p166
      %p168 = scmp.le.s32.totalorder 1, %s19
      %p169 = scmp.lt.s32.totalorder %s19, 3
      %p170 = pnand %p168, %p169
      %p171 = pneg %p170
      // Predicated region
      $region9: #{tpu_custom_call.1} parent=5 // pred_check
        _
      $region10: #{tpu_custom_call.1} parent=5 // pred_check_branch
        %173 = sbr.rel (%p170) target = $region12
      $region11: #{tpu_custom_call.1} parent=5 // pred_region
        %s174 = ssub.s32 %s19, 1
        // Predicated region
        $region13: #{tpu_custom_call.1} parent=11 // pred_check
          %p175 = pneg %p66
        $region14: #{tpu_custom_call.1} parent=11 // pred_check_branch
          %177 = sbr.rel (%p175) target = $region16
        $region15: #{tpu_custom_call.1} parent=11 // pred_region
          %s179 = ssub.s32 4096, 4096
          %180 = vsyncadd [#allocation6], %s179
          %s181 = sshll.u32 [#allocation5], 4
          %s182 = int_to_ptr.vmem [resolvable:$true] %s181
          %187 = dma.hbm_to_vmem [thread:$0]  %s1, 4096, %s182, [#allocation6], 128, 128, 8
        $region16: #{tpu_custom_call.1} parent=11 // pred_fallthru
          _
        // Predicated region
        $region17: #{tpu_custom_call.1} parent=11 // pred_check
          %p188 = pneg %p87
        $region18: #{tpu_custom_call.1} parent=11 // pred_check_branch
          %190 = sbr.rel (%p188) target = $region20
        $region19: #{tpu_custom_call.1} parent=11 // pred_region
          %s192 = ssub.s32 4096, 4096
          %193 = vsyncadd [#allocation6], %s192
          %s194 = sshll.u32 [#allocation7], 4
          %s195 = int_to_ptr.vmem [resolvable:$true] %s194
          %200 = dma.hbm_to_vmem [thread:$0]  %s2, 4096, %s195, [#allocation6], 128, 128, 8
        $region20: #{tpu_custom_call.1} parent=11 // pred_fallthru
          _
        // Predicated region
        $region21: #{tpu_custom_call.1} parent=11 // pred_check
          %p201 = pneg %p108
        $region22: #{tpu_custom_call.1} parent=11 // pred_check_branch
          %203 = sbr.rel (%p201) target = $region24
        $region23: #{tpu_custom_call.1} parent=11 // pred_region
          _
        $region24: #{tpu_custom_call.1} parent=11 // pred_fallthru
          _
      $region12: #{tpu_custom_call.1} parent=5 // pred_fallthru
        _
      %p204 = scmp.lt.s32.totalorder %s19, 2
      // Predicated region
      $region25: #{tpu_custom_call.1} parent=5 // pred_check
        %p205 = pneg %p204
      $region26: #{tpu_custom_call.1} parent=5 // pred_check_branch
        %207 = sbr.rel (%p205) target = $region28
      $region27: #{tpu_custom_call.1} parent=5 // pred_region
        // Predicated region
        $region29: #{tpu_custom_call.1} parent=27 // pred_check
          %p208 = pneg %p39
        $region30: #{tpu_custom_call.1} parent=27 // pred_check_branch
          %210 = sbr.rel (%p208) target = $region32
        $region31: #{tpu_custom_call.1} parent=27 // pred_region
          %s211 = sand.u32 %s29, 1
          %s212 = scalar_lea.sflag [#allocation3], %s211
          %s213 = sand.u32 %s29, 1
          %s214 = smul.addr %s213, 32
          %s215 = scalar_lea.vmem [#allocation2], %s214
          %s217 = ssub.s32 512, 512
          %218 = vsyncadd %s212, %s217
          %s219 = smul.addr %s19, 4
          %s220 = smul.addr %s219, 128
          %s221 = scalar_lea.hbm %s0, %s220
          %s222 = sshll.u32 %s215, 4
          %s223 = int_to_ptr.vmem [resolvable:$true] %s222
          %228 = dma.hbm_to_vmem [thread:$0]  %s221, 512, %s223, %s212, 256, 256, 16
        $region32: #{tpu_custom_call.1} parent=27 // pred_fallthru
          _
      $region28: #{tpu_custom_call.1} parent=5 // pred_fallthru
        _
      %p229 = scmp.le.s32.totalorder 1, %s19
      %p230 = scmp.lt.s32.totalorder %s19, 3
      %p231 = pnand %p229, %p230
      %p232 = pneg %p231
      // Predicated region
      $region33: #{tpu_custom_call.1} parent=5 // pred_check
        _
      $region34: #{tpu_custom_call.1} parent=5 // pred_check_branch
        %234 = sbr.rel (%p231) target = $region36
      $region35: #{tpu_custom_call.1} parent=5 // pred_region
        %s235 = ssub.s32 %s19, 1
        %s236 = sand.u32 %s32, 1
        %s237 = scalar_lea.sflag [#allocation3], %s236
        %s238 = sand.u32 %s32, 1
        %s239 = smul.addr %s238, 32
        %s240 = scalar_lea.vmem [#allocation2], %s239
        // Predicated region
        $region37: #{tpu_custom_call.1} parent=35 // pred_check
          %p241 = pneg %p45
        $region38: #{tpu_custom_call.1} parent=35 // pred_check_branch
          %243 = sbr.rel (%p241) target = $region40
        $region39: #{tpu_custom_call.1} parent=35 // pred_region
          %244 = dma.done %s237, 512
        $region40: #{tpu_custom_call.1} parent=35 // pred_fallthru
          _
        // Predicated region
        $region41: #{tpu_custom_call.1} parent=35 // pred_check
          %p245 = pneg %p66
        $region42: #{tpu_custom_call.1} parent=35 // pred_check_branch
          %247 = sbr.rel (%p245) target = $region44
        $region43: #{tpu_custom_call.1} parent=35 // pred_region
          %248 = dma.done [#allocation6], 4096
        $region44: #{tpu_custom_call.1} parent=35 // pred_fallthru
          _
        // Predicated region
        $region45: #{tpu_custom_call.1} parent=35 // pred_check
          %p249 = pneg %p87
        $region46: #{tpu_custom_call.1} parent=35 // pred_check_branch
          %251 = sbr.rel (%p249) target = $region48
        $region47: #{tpu_custom_call.1} parent=35 // pred_region
          %252 = dma.done [#allocation6], 4096
        $region48: #{tpu_custom_call.1} parent=35 // pred_fallthru
          _
        %s253 = sand.u32 %s32, 1
        %s254 = scalar_lea.sflag [#allocation3], %s253
        %s255 = sand.u32 %s32, 1
        %s256 = smul.addr %s255, 32
        %s257 = scalar_lea.vmem [#allocation2], %s256
        %p258 = pneg %p45
        %p259 = pneg %p42
        %p260 = pneg %p66
        %p261 = pneg %p63
        %p262 = pneg %p87
        %p263 = pneg %p84
        %p264 = pneg %p108
        %p265 = pneg %p105
        %p266 = pneg %p134
        %p267 = pneg %p131
        %p268 = scmp.lt.s32.totalorder %s24, 1
        %s269 = scalar_select %p268, %s24, 1
        %s270 = smul.addr %s269, 32
        %s271 = smul.addr %s270, 4
        %s272 = scalar_lea.vmem %s4, %s271
        %p273 = pneg %p160
        %p274 = pneg %p157
        %s275 = sand.u32 %s147, 1
        %s276 = scalar_lea.sflag [#allocation4], %s275
        %s277 = sand.u32 %s147, 1
        %s278 = smul.addr %s277, 16
        %s279 = scalar_lea.vmem [#allocation8], %s278
        %p280 = scmp.lt.s32.totalorder %s24, 1
        %s281 = scalar_select %p280, %s24, 1
        %s282 = smul.addr %s281, 32
        %s283 = smul.addr %s282, 4
        %s284 = scalar_lea.vmem %s4, %s283
        %v285 = vld [vmem:[%s240] sm:$0xff]
        %v286 = vld [vmem:[%s240 + $0x8] sm:$0xff]
        %v287 = vld [vmem:[%s240 + $0x10] sm:$0xff]
        %v288 = vld [vmem:[%s240 + $0x18] sm:$0xff]
        %v289 = vpack.c.bf16 %v287, %v285
        %v290 = vpack.c.bf16 %v288, %v286
        %v291 = vld [vmem:[#allocation5] sm:$0xff]
        %v292 = vld [vmem:[#allocation5 + $0x8] sm:$0xff]
        %v293 = vld [vmem:[#allocation5 + $0x10] sm:$0xff]
        %v294 = vld [vmem:[#allocation5 + $0x18] sm:$0xff]
        %v295 = vld [vmem:[#allocation5 + $0x20] sm:$0xff]
        %v296 = vld [vmem:[#allocation5 + $0x28] sm:$0xff]
        %v297 = vld [vmem:[#allocation5 + $0x30] sm:$0xff]
        %v298 = vld [vmem:[#allocation5 + $0x38] sm:$0xff]
        %v299 = vld [vmem:[#allocation5 + $0x40] sm:$0xff]
        %v300 = vld [vmem:[#allocation5 + $0x48] sm:$0xff]
        %v301 = vld [vmem:[#allocation5 + $0x50] sm:$0xff]
        %v302 = vld [vmem:[#allocation5 + $0x58] sm:$0xff]
        %v303 = vld [vmem:[#allocation5 + $0x60] sm:$0xff]
        %v304 = vld [vmem:[#allocation5 + $0x68] sm:$0xff]
        %v305 = vld [vmem:[#allocation5 + $0x70] sm:$0xff]
        %v306 = vld [vmem:[#allocation5 + $0x78] sm:$0xff]
        %v307 = vld [vmem:[#allocation5 + $0x80] sm:$0xff]
        %v308 = vld [vmem:[#allocation5 + $0x88] sm:$0xff]
        %v309 = vld [vmem:[#allocation5 + $0x90] sm:$0xff]
        %v310 = vld [vmem:[#allocation5 + $0x98] sm:$0xff]
        %v311 = vld [vmem:[#allocation5 + $0xa0] sm:$0xff]
        %v312 = vld [vmem:[#allocation5 + $0xa8] sm:$0xff]
        %v313 = vld [vmem:[#allocation5 + $0xb0] sm:$0xff]
        %v314 = vld [vmem:[#allocation5 + $0xb8] sm:$0xff]
        %v315 = vld [vmem:[#allocation5 + $0xc0] sm:$0xff]
        %v316 = vld [vmem:[#allocation5 + $0xc8] sm:$0xff]
        %v317 = vld [vmem:[#allocation5 + $0xd0] sm:$0xff]
        %v318 = vld [vmem:[#allocation5 + $0xd8] sm:$0xff]
        %v319 = vld [vmem:[#allocation5 + $0xe0] sm:$0xff]
        %v320 = vld [vmem:[#allocation5 + $0xe8] sm:$0xff]
        %v321 = vld [vmem:[#allocation5 + $0xf0] sm:$0xff]
        %v322 = vld [vmem:[#allocation5 + $0xf8] sm:$0xff]
        %v323 = vld [vmem:[%s3] ss:$2 sm:$0x3]
        %v325 = vlaneseq
        %v326 = vshrl.u32 %v325, 7
        %v327 = vsub.s32 0, %v326
        %v328 = vrot.slane %v323, %v327
        %v329 = vlaneseq
        %v330 = vshrl.u32 %v329, 7
        %v331 = vsub.s32 1, %v330
        %v332 = vrot.slane %v323, %v331
        %v367 = vunpack.c.l.b16 %v291
        %v368 = vunpack.c.h.b16 %v291
        %v369 = vunpack.c.l.b16 %v292
        %v370 = vunpack.c.h.b16 %v292
        %v371 = vunpack.c.l.b16 %v293
        %v372 = vunpack.c.h.b16 %v293
        %v373 = vunpack.c.l.b16 %v294
        %v374 = vunpack.c.h.b16 %v294
        %v375 = vunpack.c.l.b16 %v295
        %v376 = vunpack.c.h.b16 %v295
        %v377 = vunpack.c.l.b16 %v296
        %v378 = vunpack.c.h.b16 %v296
        %v379 = vunpack.c.l.b16 %v297
        %v380 = vunpack.c.h.b16 %v297
        %v381 = vunpack.c.l.b16 %v298
        %v382 = vunpack.c.h.b16 %v298
        %v383 = vunpack.c.l.b16 %v299
        %v384 = vunpack.c.h.b16 %v299
        %v385 = vunpack.c.l.b16 %v300
        %v386 = vunpack.c.h.b16 %v300
        %v387 = vunpack.c.l.b16 %v301
        %v388 = vunpack.c.h.b16 %v301
        %v389 = vunpack.c.l.b16 %v302
        %v390 = vunpack.c.h.b16 %v302
        %v391 = vunpack.c.l.b16 %v303
        %v392 = vunpack.c.h.b16 %v303
        %v393 = vunpack.c.l.b16 %v304
        %v394 = vunpack.c.h.b16 %v304
        %v395 = vunpack.c.l.b16 %v305
        %v396 = vunpack.c.h.b16 %v305
        %v397 = vunpack.c.l.b16 %v306
        %v398 = vunpack.c.h.b16 %v306
        %v399 = vunpack.c.l.b16 %v307
        %v400 = vunpack.c.h.b16 %v307
        %v401 = vunpack.c.l.b16 %v308
        %v402 = vunpack.c.h.b16 %v308
        %v403 = vunpack.c.l.b16 %v309
        %v404 = vunpack.c.h.b16 %v309
        %v405 = vunpack.c.l.b16 %v310
        %v406 = vunpack.c.h.b16 %v310
        %v407 = vunpack.c.l.b16 %v311
        %v408 = vunpack.c.h.b16 %v311
        %v409 = vunpack.c.l.b16 %v312
        %v410 = vunpack.c.h.b16 %v312
        %v411 = vunpack.c.l.b16 %v313
        %v412 = vunpack.c.h.b16 %v313
        %v413 = vunpack.c.l.b16 %v314
        %v414 = vunpack.c.h.b16 %v314
        %v415 = vunpack.c.l.b16 %v315
        %v416 = vunpack.c.h.b16 %v315
        %v417 = vunpack.c.l.b16 %v316
        %v418 = vunpack.c.h.b16 %v316
        %v419 = vunpack.c.l.b16 %v317
        %v420 = vunpack.c.h.b16 %v317
        %v421 = vunpack.c.l.b16 %v318
        %v422 = vunpack.c.h.b16 %v318
        %v423 = vunpack.c.l.b16 %v319
        %v424 = vunpack.c.h.b16 %v319
        %v425 = vunpack.c.l.b16 %v320
        %v426 = vunpack.c.h.b16 %v320
        %v427 = vunpack.c.l.b16 %v321
        %v428 = vunpack.c.h.b16 %v321
        %v429 = vunpack.c.l.b16 %v322
        %v430 = vunpack.c.h.b16 %v322
        %v431 = vpack.c.b16 %v369, %v367
        %v432 = vpack.c.b16 %v370, %v368
        %v433 = vpack.c.b16 %v373, %v371
        %v434 = vpack.c.b16 %v374, %v372
        %v435 = vpack.c.b16 %v377, %v375
        %v436 = vpack.c.b16 %v378, %v376
        %v437 = vpack.c.b16 %v381, %v379
        %v438 = vpack.c.b16 %v382, %v380
        %v439 = vpack.c.b16 %v385, %v383
        %v440 = vpack.c.b16 %v386, %v384
        %v441 = vpack.c.b16 %v389, %v387
        %v442 = vpack.c.b16 %v390, %v388
        %v443 = vpack.c.b16 %v393, %v391
        %v444 = vpack.c.b16 %v394, %v392
        %v445 = vpack.c.b16 %v397, %v395
        %v446 = vpack.c.b16 %v398, %v396
        %v447 = vpack.c.b16 %v401, %v399
        %v448 = vpack.c.b16 %v402, %v400
        %v449 = vpack.c.b16 %v405, %v403
        %v450 = vpack.c.b16 %v406, %v404
        %v451 = vpack.c.b16 %v409, %v407
        %v452 = vpack.c.b16 %v410, %v408
        %v453 = vpack.c.b16 %v413, %v411
        %v454 = vpack.c.b16 %v414, %v412
        %v455 = vpack.c.b16 %v417, %v415
        %v456 = vpack.c.b16 %v418, %v416
        %v457 = vpack.c.b16 %v421, %v419
        %v458 = vpack.c.b16 %v422, %v420
        %v459 = vpack.c.b16 %v425, %v423
        %v460 = vpack.c.b16 %v426, %v424
        %v461 = vpack.c.b16 %v429, %v427
        %v462 = vpack.c.b16 %v430, %v428
        %495 = vmatprep.subr.bf16.mxu0 %v432
        %496 = vmatpush1.bf16.msra.mxu0 %v431
        %497 = vmatprep.subr.bf16.mxu0 %v434
        %498 = vmatpush1.bf16.msra.mxu0 %v433
        %499 = vmatprep.subr.bf16.mxu0 %v436
        %500 = vmatpush1.bf16.msra.mxu0 %v435
        %501 = vmatprep.subr.bf16.mxu0 %v438
        %502 = vmatpush1.bf16.msra.mxu0 %v437
        %503 = vmatprep.subr.bf16.mxu0 %v440
        %504 = vmatpush1.bf16.msra.mxu0 %v439
        %505 = vmatprep.subr.bf16.mxu0 %v442
        %506 = vmatpush1.bf16.msra.mxu0 %v441
        %507 = vmatprep.subr.bf16.mxu0 %v444
        %508 = vmatpush1.bf16.msra.mxu0 %v443
        %509 = vmatprep.subr.bf16.mxu0 %v446
        %510 = vmatpush1.bf16.msra.mxu0 %v445
        %511 = vmatprep.subr.bf16.mxu0 %v448
        %512 = vmatpush1.bf16.msra.mxu0 %v447
        %513 = vmatprep.subr.bf16.mxu0 %v450
        %514 = vmatpush1.bf16.msra.mxu0 %v449
        %515 = vmatprep.subr.bf16.mxu0 %v452
        %516 = vmatpush1.bf16.msra.mxu0 %v451
        %517 = vmatprep.subr.bf16.mxu0 %v454
        %518 = vmatpush1.bf16.msra.mxu0 %v453
        %519 = vmatprep.subr.bf16.mxu0 %v456
        %520 = vmatpush1.bf16.msra.mxu0 %v455
        %521 = vmatprep.subr.bf16.mxu0 %v458
        %522 = vmatpush1.bf16.msra.mxu0 %v457
        %523 = vmatprep.subr.bf16.mxu0 %v460
        %524 = vmatpush1.bf16.msra.mxu0 %v459
        %525 = vmatprep.subr.bf16.mxu0 %v462
        %526 = vmatpush1.bf16.msra.mxu0 %v461
        %527 = vmatprep.mubr.bf16.mxu0 %v290
        %528 = vmatmul.mubr.bf16.gmra.mrb[0].mxu0 %v289
        %v529 = vpop.f32.mrb[0].mxu0
        %v530 = vadd.f32 %v328, %v529
        %v531 = vpop.f32.mrb[0].mxu0
        %v532 = vadd.f32 %v332, %v531
        %v533 = vpop.f32.mrb[0].mxu0
        %v534 = vadd.f32 %v328, %v533
        %v535 = vpop.f32.mrb[0].mxu0
        %v536 = vadd.f32 %v332, %v535
        %537 = vdwg.mxu0
        %v538 = vld [vmem:[#allocation7] sm:$0xff]
        %v539 = vld [vmem:[#allocation7 + $0x8] sm:$0xff]
        %v540 = vld [vmem:[#allocation7 + $0x10] sm:$0xff]
        %v541 = vld [vmem:[#allocation7 + $0x18] sm:$0xff]
        %v542 = vld [vmem:[#allocation7 + $0x20] sm:$0xff]
        %v543 = vld [vmem:[#allocation7 + $0x28] sm:$0xff]
        %v544 = vld [vmem:[#allocation7 + $0x30] sm:$0xff]
        %v545 = vld [vmem:[#allocation7 + $0x38] sm:$0xff]
        %v546 = vld [vmem:[#allocation7 + $0x40] sm:$0xff]
        %v547 = vld [vmem:[#allocation7 + $0x48] sm:$0xff]
        %v548 = vld [vmem:[#allocation7 + $0x50] sm:$0xff]
        %v549 = vld [vmem:[#allocation7 + $0x58] sm:$0xff]
        %v550 = vld [vmem:[#allocation7 + $0x60] sm:$0xff]
        %v551 = vld [vmem:[#allocation7 + $0x68] sm:$0xff]
        %v552 = vld [vmem:[#allocation7 + $0x70] sm:$0xff]
        %v553 = vld [vmem:[#allocation7 + $0x78] sm:$0xff]
        %v554 = vld [vmem:[#allocation7 + $0x80] sm:$0xff]
        %v555 = vld [vmem:[#allocation7 + $0x88] sm:$0xff]
        %v556 = vld [vmem:[#allocation7 + $0x90] sm:$0xff]
        %v557 = vld [vmem:[#allocation7 + $0x98] sm:$0xff]
        %v558 = vld [vmem:[#allocation7 + $0xa0] sm:$0xff]
        %v559 = vld [vmem:[#allocation7 + $0xa8] sm:$0xff]
        %v560 = vld [vmem:[#allocation7 + $0xb0] sm:$0xff]
        %v561 = vld [vmem:[#allocation7 + $0xb8] sm:$0xff]
        %v562 = vld [vmem:[#allocation7 + $0xc0] sm:$0xff]
        %v563 = vld [vmem:[#allocation7 + $0xc8] sm:$0xff]
        %v564 = vld [vmem:[#allocation7 + $0xd0] sm:$0xff]
        %v565 = vld [vmem:[#allocation7 + $0xd8] sm:$0xff]
        %v566 = vld [vmem:[#allocation7 + $0xe0] sm:$0xff]
        %v567 = vld [vmem:[#allocation7 + $0xe8] sm:$0xff]
        %v568 = vld [vmem:[#allocation7 + $0xf0] sm:$0xff]
        %v569 = vld [vmem:[#allocation7 + $0xf8] sm:$0xff]
        %s570 = scalar_lea.vmem %s3, 1
        %v571 = vld [vmem:[%s570] ss:$2 sm:$0x3]
        %v573 = vlaneseq
        %v574 = vshrl.u32 %v573, 7
        %v575 = vsub.s32 0, %v574
        %v576 = vrot.slane %v571, %v575
        %v577 = vlaneseq
        %v578 = vshrl.u32 %v577, 7
        %v579 = vsub.s32 1, %v578
        %v580 = vrot.slane %v571, %v579
        %v615 = vunpack.c.l.b16 %v538
        %v616 = vunpack.c.h.b16 %v538
        %v617 = vunpack.c.l.b16 %v539
        %v618 = vunpack.c.h.b16 %v539
        %v619 = vunpack.c.l.b16 %v540
        %v620 = vunpack.c.h.b16 %v540
        %v621 = vunpack.c.l.b16 %v541
        %v622 = vunpack.c.h.b16 %v541
        %v623 = vunpack.c.l.b16 %v542
        %v624 = vunpack.c.h.b16 %v542
        %v625 = vunpack.c.l.b16 %v543
        %v626 = vunpack.c.h.b16 %v543
        %v627 = vunpack.c.l.b16 %v544
        %v628 = vunpack.c.h.b16 %v544
        %v629 = vunpack.c.l.b16 %v545
        %v630 = vunpack.c.h.b16 %v545
        %v631 = vunpack.c.l.b16 %v546
        %v632 = vunpack.c.h.b16 %v546
        %v633 = vunpack.c.l.b16 %v547
        %v634 = vunpack.c.h.b16 %v547
        %v635 = vunpack.c.l.b16 %v548
        %v636 = vunpack.c.h.b16 %v548
        %v637 = vunpack.c.l.b16 %v549
        %v638 = vunpack.c.h.b16 %v549
        %v639 = vunpack.c.l.b16 %v550
        %v640 = vunpack.c.h.b16 %v550
        %v641 = vunpack.c.l.b16 %v551
        %v642 = vunpack.c.h.b16 %v551
        %v643 = vunpack.c.l.b16 %v552
        %v644 = vunpack.c.h.b16 %v552
        %v645 = vunpack.c.l.b16 %v553
        %v646 = vunpack.c.h.b16 %v553
        %v647 = vunpack.c.l.b16 %v554
        %v648 = vunpack.c.h.b16 %v554
        %v649 = vunpack.c.l.b16 %v555
        %v650 = vunpack.c.h.b16 %v555
        %v651 = vunpack.c.l.b16 %v556
        %v652 = vunpack.c.h.b16 %v556
        %v653 = vunpack.c.l.b16 %v557
        %v654 = vunpack.c.h.b16 %v557
        %v655 = vunpack.c.l.b16 %v558
        %v656 = vunpack.c.h.b16 %v558
        %v657 = vunpack.c.l.b16 %v559
        %v658 = vunpack.c.h.b16 %v559
        %v659 = vunpack.c.l.b16 %v560
        %v660 = vunpack.c.h.b16 %v560
        %v661 = vunpack.c.l.b16 %v561
        %v662 = vunpack.c.h.b16 %v561
        %v663 = vunpack.c.l.b16 %v562
        %v664 = vunpack.c.h.b16 %v562
        %v665 = vunpack.c.l.b16 %v563
        %v666 = vunpack.c.h.b16 %v563
        %v667 = vunpack.c.l.b16 %v564
        %v668 = vunpack.c.h.b16 %v564
        %v669 = vunpack.c.l.b16 %v565
        %v670 = vunpack.c.h.b16 %v565
        %v671 = vunpack.c.l.b16 %v566
        %v672 = vunpack.c.h.b16 %v566
        %v673 = vunpack.c.l.b16 %v567
        %v674 = vunpack.c.h.b16 %v567
        %v675 = vunpack.c.l.b16 %v568
        %v676 = vunpack.c.h.b16 %v568
        %v677 = vunpack.c.l.b16 %v569
        %v678 = vunpack.c.h.b16 %v569
        %v679 = vpack.c.b16 %v617, %v615
        %v680 = vpack.c.b16 %v618, %v616
        %v681 = vpack.c.b16 %v621, %v619
        %v682 = vpack.c.b16 %v622, %v620
        %v683 = vpack.c.b16 %v625, %v623
        %v684 = vpack.c.b16 %v626, %v624
        %v685 = vpack.c.b16 %v629, %v627
        %v686 = vpack.c.b16 %v630, %v628
        %v687 = vpack.c.b16 %v633, %v631
        %v688 = vpack.c.b16 %v634, %v632
        %v689 = vpack.c.b16 %v637, %v635
        %v690 = vpack.c.b16 %v638, %v636
        %v691 = vpack.c.b16 %v641, %v639
        %v692 = vpack.c.b16 %v642, %v640
        %v693 = vpack.c.b16 %v645, %v643
        %v694 = vpack.c.b16 %v646, %v644
        %v695 = vpack.c.b16 %v649, %v647
        %v696 = vpack.c.b16 %v650, %v648
        %v697 = vpack.c.b16 %v653, %v651
        %v698 = vpack.c.b16 %v654, %v652
        %v699 = vpack.c.b16 %v657, %v655
        %v700 = vpack.c.b16 %v658, %v656
        %v701 = vpack.c.b16 %v661, %v659
        %v702 = vpack.c.b16 %v662, %v660
        %v703 = vpack.c.b16 %v665, %v663
        %v704 = vpack.c.b16 %v666, %v664
        %v705 = vpack.c.b16 %v669, %v667
        %v706 = vpack.c.b16 %v670, %v668
        %v707 = vpack.c.b16 %v673, %v671
        %v708 = vpack.c.b16 %v674, %v672
        %v709 = vpack.c.b16 %v677, %v675
        %v710 = vpack.c.b16 %v678, %v676
        %743 = vmatprep.subr.bf16.mxu0 %v680
        %744 = vmatpush1.bf16.msra.mxu0 %v679
        %745 = vmatprep.subr.bf16.mxu0 %v682
        %746 = vmatpush1.bf16.msra.mxu0 %v681
        %747 = vmatprep.subr.bf16.mxu0 %v684
        %748 = vmatpush1.bf16.msra.mxu0 %v683
        %749 = vmatprep.subr.bf16.mxu0 %v686
        %750 = vmatpush1.bf16.msra.mxu0 %v685
        %751 = vmatprep.subr.bf16.mxu0 %v688
        %752 = vmatpush1.bf16.msra.mxu0 %v687
        %753 = vmatprep.subr.bf16.mxu0 %v690
        %754 = vmatpush1.bf16.msra.mxu0 %v689
        %755 = vmatprep.subr.bf16.mxu0 %v692
        %756 = vmatpush1.bf16.msra.mxu0 %v691
        %757 = vmatprep.subr.bf16.mxu0 %v694
        %758 = vmatpush1.bf16.msra.mxu0 %v693
        %759 = vmatprep.subr.bf16.mxu0 %v696
        %760 = vmatpush1.bf16.msra.mxu0 %v695
        %761 = vmatprep.subr.bf16.mxu0 %v698
        %762 = vmatpush1.bf16.msra.mxu0 %v697
        %763 = vmatprep.subr.bf16.mxu0 %v700
        %764 = vmatpush1.bf16.msra.mxu0 %v699
        %765 = vmatprep.subr.bf16.mxu0 %v702
        %766 = vmatpush1.bf16.msra.mxu0 %v701
        %767 = vmatprep.subr.bf16.mxu0 %v704
        %768 = vmatpush1.bf16.msra.mxu0 %v703
        %769 = vmatprep.subr.bf16.mxu0 %v706
        %770 = vmatpush1.bf16.msra.mxu0 %v705
        %771 = vmatprep.subr.bf16.mxu0 %v708
        %772 = vmatpush1.bf16.msra.mxu0 %v707
        %773 = vmatprep.subr.bf16.mxu0 %v710
        %774 = vmatpush1.bf16.msra.mxu0 %v709
        %775 = vmatprep.mubr.bf16.mxu0 %v290
        %776 = vmatmul.mubr.bf16.gmra.mrb[0].mxu0 %v289
        %v777 = vpop.f32.mrb[0].mxu0
        %v778 = vadd.f32 %v576, %v777
        %v779 = vpop.f32.mrb[0].mxu0
        %v780 = vadd.f32 %v580, %v779
        %v781 = vpop.f32.mrb[0].mxu0
        %v782 = vadd.f32 %v576, %v781
        %v783 = vpop.f32.mrb[0].mxu0
        %v784 = vadd.f32 %v580, %v783
        %785 = vdwg.mxu0
        %v786 = vcombine.high %v530, 0.0
        %v788 = vunpack.c.l.s4 1983009808
        %v789 = vunpack.c.0.s8 %v788
        %v790 = vlaneseq
        %v791 = vshrl.u32 %v790, 7
        %v792 = vsub.s32 %v789, %v791
        %v793 = vrot.slane %v530, %v792
        %v795 = vunpack.c.l.s4 1983009808
        %v796 = vunpack.c.0.s8 %v795
        %v797 = vlaneseq
        %v798 = vshrl.u32 %v797, 7
        %v799 = vsub.s32 %v796, %v798
        %v800 = vrot.slane %v786, %v799
        %v801 = vcombine.high %v532, 0.0
        %v803 = vunpack.c.l.s4 1983009808
        %v804 = vunpack.c.0.s8 %v803
        %v805 = vlaneseq
        %v806 = vshrl.u32 %v805, 7
        %v807 = vsub.s32 %v804, %v806
        %v808 = vrot.slane %v532, %v807
        %v810 = vunpack.c.l.s4 1983009808
        %v811 = vunpack.c.0.s8 %v810
        %v812 = vlaneseq
        %v813 = vshrl.u32 %v812, 7
        %v814 = vsub.s32 %v811, %v813
        %v815 = vrot.slane %v801, %v814
        %v816 = vcombine.low %v793, %v808
        %v817 = vcombine.high %v793, %v808
        %v819 = vunpack.c.l.s4 1934713408
        %v820 = vunpack.c.0.s8 %v819
        %v821 = vlaneseq
        %v822 = vshrl.u32 %v821, 7
        %v823 = vsub.s32 %v820, %v822
        %v824 = vrot.slane %v816, %v823
        %v826 = vunpack.c.l.s4 1934713408
        %v827 = vunpack.c.0.s8 %v826
        %v828 = vlaneseq
        %v829 = vshrl.u32 %v828, 7
        %v830 = vsub.s32 %v827, %v829
        %v831 = vrot.slane %v817, %v830
        %v832 = vcombine.low %v800, %v815
        %v833 = vcombine.high %v800, %v815
        %v835 = vunpack.c.l.s4 1934713408
        %v836 = vunpack.c.0.s8 %v835
        %v837 = vlaneseq
        %v838 = vshrl.u32 %v837, 7
        %v839 = vsub.s32 %v836, %v838
        %v840 = vrot.slane %v832, %v839
        %v842 = vunpack.c.l.s4 1934713408
        %v843 = vunpack.c.0.s8 %v842
        %v844 = vlaneseq
        %v845 = vshrl.u32 %v844, 7
        %v846 = vsub.s32 %v843, %v845
        %v847 = vrot.slane %v833, %v846
        %v848 = vcombine.high %v824, 0.0
        %v849 = vcombine.high %v831, 0.0
        %v850 = vcombine.high %v840, 0.0
        %v851 = vcombine.high %v847, 0.0
        %v852 = vcombine.high %v534, 0.0
        %v854 = vunpack.c.l.s4 1983009808
        %v855 = vunpack.c.0.s8 %v854
        %v856 = vlaneseq
        %v857 = vshrl.u32 %v856, 7
        %v858 = vsub.s32 %v855, %v857
        %v859 = vrot.slane %v534, %v858
        %v861 = vunpack.c.l.s4 1983009808
        %v862 = vunpack.c.0.s8 %v861
        %v863 = vlaneseq
        %v864 = vshrl.u32 %v863, 7
        %v865 = vsub.s32 %v862, %v864
        %v866 = vrot.slane %v852, %v865
        %v867 = vcombine.high %v536, 0.0
        %v869 = vunpack.c.l.s4 1983009808
        %v870 = vunpack.c.0.s8 %v869
        %v871 = vlaneseq
        %v872 = vshrl.u32 %v871, 7
        %v873 = vsub.s32 %v870, %v872
        %v874 = vrot.slane %v536, %v873
        %v876 = vunpack.c.l.s4 1983009808
        %v877 = vunpack.c.0.s8 %v876
        %v878 = vlaneseq
        %v879 = vshrl.u32 %v878, 7
        %v880 = vsub.s32 %v877, %v879
        %v881 = vrot.slane %v867, %v880
        %v882 = vcombine.low %v859, %v874
        %v883 = vcombine.high %v859, %v874
        %v885 = vunpack.c.l.s4 1934713408
        %v886 = vunpack.c.0.s8 %v885
        %v887 = vlaneseq
        %v888 = vshrl.u32 %v887, 7
        %v889 = vsub.s32 %v886, %v888
        %v890 = vrot.slane %v882, %v889
        %v892 = vunpack.c.l.s4 1934713408
        %v893 = vunpack.c.0.s8 %v892
        %v894 = vlaneseq
        %v895 = vshrl.u32 %v894, 7
        %v896 = vsub.s32 %v893, %v895
        %v897 = vrot.slane %v883, %v896
        %v898 = vcombine.low %v866, %v881
        %v899 = vcombine.high %v866, %v881
        %v901 = vunpack.c.l.s4 1934713408
        %v902 = vunpack.c.0.s8 %v901
        %v903 = vlaneseq
        %v904 = vshrl.u32 %v903, 7
        %v905 = vsub.s32 %v902, %v904
        %v906 = vrot.slane %v898, %v905
        %v908 = vunpack.c.l.s4 1934713408
        %v909 = vunpack.c.0.s8 %v908
        %v910 = vlaneseq
        %v911 = vshrl.u32 %v910, 7
        %v912 = vsub.s32 %v909, %v911
        %v913 = vrot.slane %v899, %v912
        %v914 = vcombine.high %v890, 0.0
        %v915 = vcombine.high %v897, 0.0
        %v916 = vcombine.high %v906, 0.0
        %v917 = vcombine.high %v913, 0.0
        %v918 = vcombine.low %v824, %v831
        %v920 = vunpack.c.l.s4 1983009808
        %v921 = vunpack.c.0.s8 %v920
        %v922 = vlaneseq
        %v923 = vshrl.u32 %v922, 7
        %v924 = vsub.s32 %v921, %v923
        %v925 = vrot.slane %v918, %v924
        %v926 = vcombine.low %v848, %v849
        %v928 = vunpack.c.l.s4 1983009808
        %v929 = vunpack.c.0.s8 %v928
        %v930 = vlaneseq
        %v931 = vshrl.u32 %v930, 7
        %v932 = vsub.s32 %v929, %v931
        %v933 = vrot.slane %v926, %v932
        %v934 = vcombine.low %v840, %v847
        %v936 = vunpack.c.l.s4 1983009808
        %v937 = vunpack.c.0.s8 %v936
        %v938 = vlaneseq
        %v939 = vshrl.u32 %v938, 7
        %v940 = vsub.s32 %v937, %v939
        %v941 = vrot.slane %v934, %v940
        %v942 = vcombine.low %v850, %v851
        %v944 = vunpack.c.l.s4 1983009808
        %v945 = vunpack.c.0.s8 %v944
        %v946 = vlaneseq
        %v947 = vshrl.u32 %v946, 7
        %v948 = vsub.s32 %v945, %v947
        %v949 = vrot.slane %v942, %v948
        %v950 = vcombine.low %v925, %v933
        %v952 = vunpack.c.l.s4 1934713408
        %v953 = vunpack.c.0.s8 %v952
        %v954 = vlaneseq
        %v955 = vshrl.u32 %v954, 7
        %v956 = vsub.s32 %v953, %v955
        %v957 = vrot.slane %v950, %v956
        %v958 = vcombine.low %v941, %v949
        %v960 = vunpack.c.l.s4 1934713408
        %v961 = vunpack.c.0.s8 %v960
        %v962 = vlaneseq
        %v963 = vshrl.u32 %v962, 7
        %v964 = vsub.s32 %v961, %v963
        %v965 = vrot.slane %v958, %v964
        %v966 = vcombine.low %v957, %v965
        %v967 = vcombine.high %v957, %v965
        %v968 = vcombine.low %v890, %v897
        %v970 = vunpack.c.l.s4 1983009808
        %v971 = vunpack.c.0.s8 %v970
        %v972 = vlaneseq
        %v973 = vshrl.u32 %v972, 7
        %v974 = vsub.s32 %v971, %v973
        %v975 = vrot.slane %v968, %v974
        %v976 = vcombine.low %v914, %v915
        %v978 = vunpack.c.l.s4 1983009808
        %v979 = vunpack.c.0.s8 %v978
        %v980 = vlaneseq
        %v981 = vshrl.u32 %v980, 7
        %v982 = vsub.s32 %v979, %v981
        %v983 = vrot.slane %v976, %v982
        %v984 = vcombine.low %v906, %v913
        %v986 = vunpack.c.l.s4 1983009808
        %v987 = vunpack.c.0.s8 %v986
        %v988 = vlaneseq
        %v989 = vshrl.u32 %v988, 7
        %v990 = vsub.s32 %v987, %v989
        %v991 = vrot.slane %v984, %v990
        %v992 = vcombine.low %v916, %v917
        %v994 = vunpack.c.l.s4 1983009808
        %v995 = vunpack.c.0.s8 %v994
        %v996 = vlaneseq
        %v997 = vshrl.u32 %v996, 7
        %v998 = vsub.s32 %v995, %v997
        %v999 = vrot.slane %v992, %v998
        %v1000 = vcombine.low %v975, %v983
        %v1002 = vunpack.c.l.s4 1934713408
        %v1003 = vunpack.c.0.s8 %v1002
        %v1004 = vlaneseq
        %v1005 = vshrl.u32 %v1004, 7
        %v1006 = vsub.s32 %v1003, %v1005
        %v1007 = vrot.slane %v1000, %v1006
        %v1008 = vcombine.low %v991, %v999
        %v1010 = vunpack.c.l.s4 1934713408
        %v1011 = vunpack.c.0.s8 %v1010
        %v1012 = vlaneseq
        %v1013 = vshrl.u32 %v1012, 7
        %v1014 = vsub.s32 %v1011, %v1013
        %v1015 = vrot.slane %v1008, %v1014
        %v1016 = vcombine.low %v1007, %v1015
        %v1017 = vcombine.high %v1007, %v1015
        %v1018 = vcombine.high %v778, 0.0
        %v1020 = vunpack.c.l.s4 1983009808
        %v1021 = vunpack.c.0.s8 %v1020
        %v1022 = vlaneseq
        %v1023 = vshrl.u32 %v1022, 7
        %v1024 = vsub.s32 %v1021, %v1023
        %v1025 = vrot.slane %v778, %v1024
        %v1027 = vunpack.c.l.s4 1983009808
        %v1028 = vunpack.c.0.s8 %v1027
        %v1029 = vlaneseq
        %v1030 = vshrl.u32 %v1029, 7
        %v1031 = vsub.s32 %v1028, %v1030
        %v1032 = vrot.slane %v1018, %v1031
        %v1033 = vcombine.high %v780, 0.0
        %v1035 = vunpack.c.l.s4 1983009808
        %v1036 = vunpack.c.0.s8 %v1035
        %v1037 = vlaneseq
        %v1038 = vshrl.u32 %v1037, 7
        %v1039 = vsub.s32 %v1036, %v1038
        %v1040 = vrot.slane %v780, %v1039
        %v1042 = vunpack.c.l.s4 1983009808
        %v1043 = vunpack.c.0.s8 %v1042
        %v1044 = vlaneseq
        %v1045 = vshrl.u32 %v1044, 7
        %v1046 = vsub.s32 %v1043, %v1045
        %v1047 = vrot.slane %v1033, %v1046
        %v1048 = vcombine.low %v1025, %v1040
        %v1049 = vcombine.high %v1025, %v1040
        %v1051 = vunpack.c.l.s4 1934713408
        %v1052 = vunpack.c.0.s8 %v1051
        %v1053 = vlaneseq
        %v1054 = vshrl.u32 %v1053, 7
        %v1055 = vsub.s32 %v1052, %v1054
        %v1056 = vrot.slane %v1048, %v1055
        %v1058 = vunpack.c.l.s4 1934713408
        %v1059 = vunpack.c.0.s8 %v1058
        %v1060 = vlaneseq
        %v1061 = vshrl.u32 %v1060, 7
        %v1062 = vsub.s32 %v1059, %v1061
        %v1063 = vrot.slane %v1049, %v1062
        %v1064 = vcombine.low %v1032, %v1047
        %v1065 = vcombine.high %v1032, %v1047
        %v1067 = vunpack.c.l.s4 1934713408
        %v1068 = vunpack.c.0.s8 %v1067
        %v1069 = vlaneseq
        %v1070 = vshrl.u32 %v1069, 7
        %v1071 = vsub.s32 %v1068, %v1070
        %v1072 = vrot.slane %v1064, %v1071
        %v1074 = vunpack.c.l.s4 1934713408
        %v1075 = vunpack.c.0.s8 %v1074
        %v1076 = vlaneseq
        %v1077 = vshrl.u32 %v1076, 7
        %v1078 = vsub.s32 %v1075, %v1077
        %v1079 = vrot.slane %v1065, %v1078
        %v1080 = vcombine.high %v1056, 0.0
        %v1081 = vcombine.high %v1063, 0.0
        %v1082 = vcombine.high %v1072, 0.0
        %v1083 = vcombine.high %v1079, 0.0
        %v1084 = vcombine.high %v782, 0.0
        %v1086 = vunpack.c.l.s4 1983009808
        %v1087 = vunpack.c.0.s8 %v1086
        %v1088 = vlaneseq
        %v1089 = vshrl.u32 %v1088, 7
        %v1090 = vsub.s32 %v1087, %v1089
        %v1091 = vrot.slane %v782, %v1090
        %v1093 = vunpack.c.l.s4 1983009808
        %v1094 = vunpack.c.0.s8 %v1093
        %v1095 = vlaneseq
        %v1096 = vshrl.u32 %v1095, 7
        %v1097 = vsub.s32 %v1094, %v1096
        %v1098 = vrot.slane %v1084, %v1097
        %v1099 = vcombine.high %v784, 0.0
        %v1101 = vunpack.c.l.s4 1983009808
        %v1102 = vunpack.c.0.s8 %v1101
        %v1103 = vlaneseq
        %v1104 = vshrl.u32 %v1103, 7
        %v1105 = vsub.s32 %v1102, %v1104
        %v1106 = vrot.slane %v784, %v1105
        %v1108 = vunpack.c.l.s4 1983009808
        %v1109 = vunpack.c.0.s8 %v1108
        %v1110 = vlaneseq
        %v1111 = vshrl.u32 %v1110, 7
        %v1112 = vsub.s32 %v1109, %v1111
        %v1113 = vrot.slane %v1099, %v1112
        %v1114 = vcombine.low %v1091, %v1106
        %v1115 = vcombine.high %v1091, %v1106
        %v1117 = vunpack.c.l.s4 1934713408
        %v1118 = vunpack.c.0.s8 %v1117
        %v1119 = vlaneseq
        %v1120 = vshrl.u32 %v1119, 7
        %v1121 = vsub.s32 %v1118, %v1120
        %v1122 = vrot.slane %v1114, %v1121
        %v1124 = vunpack.c.l.s4 1934713408
        %v1125 = vunpack.c.0.s8 %v1124
        %v1126 = vlaneseq
        %v1127 = vshrl.u32 %v1126, 7
        %v1128 = vsub.s32 %v1125, %v1127
        %v1129 = vrot.slane %v1115, %v1128
        %v1130 = vcombine.low %v1098, %v1113
        %v1131 = vcombine.high %v1098, %v1113
        %v1133 = vunpack.c.l.s4 1934713408
        %v1134 = vunpack.c.0.s8 %v1133
        %v1135 = vlaneseq
        %v1136 = vshrl.u32 %v1135, 7
        %v1137 = vsub.s32 %v1134, %v1136
        %v1138 = vrot.slane %v1130, %v1137
        %v1140 = vunpack.c.l.s4 1934713408
        %v1141 = vunpack.c.0.s8 %v1140
        %v1142 = vlaneseq
        %v1143 = vshrl.u32 %v1142, 7
        %v1144 = vsub.s32 %v1141, %v1143
        %v1145 = vrot.slane %v1131, %v1144
        %v1146 = vcombine.high %v1122, 0.0
        %v1147 = vcombine.high %v1129, 0.0
        %v1148 = vcombine.high %v1138, 0.0
        %v1149 = vcombine.high %v1145, 0.0
        %v1150 = vcombine.low %v1056, %v1063
        %v1152 = vunpack.c.l.s4 1983009808
        %v1153 = vunpack.c.0.s8 %v1152
        %v1154 = vlaneseq
        %v1155 = vshrl.u32 %v1154, 7
        %v1156 = vsub.s32 %v1153, %v1155
        %v1157 = vrot.slane %v1150, %v1156
        %v1158 = vcombine.low %v1080, %v1081
        %v1160 = vunpack.c.l.s4 1983009808
        %v1161 = vunpack.c.0.s8 %v1160
        %v1162 = vlaneseq
        %v1163 = vshrl.u32 %v1162, 7
        %v1164 = vsub.s32 %v1161, %v1163
        %v1165 = vrot.slane %v1158, %v1164
        %v1166 = vcombine.low %v1072, %v1079
        %v1168 = vunpack.c.l.s4 1983009808
        %v1169 = vunpack.c.0.s8 %v1168
        %v1170 = vlaneseq
        %v1171 = vshrl.u32 %v1170, 7
        %v1172 = vsub.s32 %v1169, %v1171
        %v1173 = vrot.slane %v1166, %v1172
        %v1174 = vcombine.low %v1082, %v1083
        %v1176 = vunpack.c.l.s4 1983009808
        %v1177 = vunpack.c.0.s8 %v1176
        %v1178 = vlaneseq
        %v1179 = vshrl.u32 %v1178, 7
        %v1180 = vsub.s32 %v1177, %v1179
        %v1181 = vrot.slane %v1174, %v1180
        %v1182 = vcombine.low %v1157, %v1165
        %v1184 = vunpack.c.l.s4 1934713408
        %v1185 = vunpack.c.0.s8 %v1184
        %v1186 = vlaneseq
        %v1187 = vshrl.u32 %v1186, 7
        %v1188 = vsub.s32 %v1185, %v1187
        %v1189 = vrot.slane %v1182, %v1188
        %v1190 = vcombine.low %v1173, %v1181
        %v1192 = vunpack.c.l.s4 1934713408
        %v1193 = vunpack.c.0.s8 %v1192
        %v1194 = vlaneseq
        %v1195 = vshrl.u32 %v1194, 7
        %v1196 = vsub.s32 %v1193, %v1195
        %v1197 = vrot.slane %v1190, %v1196
        %v1198 = vcombine.low %v1189, %v1197
        %v1199 = vcombine.high %v1189, %v1197
        %v1200 = vcombine.low %v1122, %v1129
        %v1202 = vunpack.c.l.s4 1983009808
        %v1203 = vunpack.c.0.s8 %v1202
        %v1204 = vlaneseq
        %v1205 = vshrl.u32 %v1204, 7
        %v1206 = vsub.s32 %v1203, %v1205
        %v1207 = vrot.slane %v1200, %v1206
        %v1208 = vcombine.low %v1146, %v1147
        %v1210 = vunpack.c.l.s4 1983009808
        %v1211 = vunpack.c.0.s8 %v1210
        %v1212 = vlaneseq
        %v1213 = vshrl.u32 %v1212, 7
        %v1214 = vsub.s32 %v1211, %v1213
        %v1215 = vrot.slane %v1208, %v1214
        %v1216 = vcombine.low %v1138, %v1145
        %v1218 = vunpack.c.l.s4 1983009808
        %v1219 = vunpack.c.0.s8 %v1218
        %v1220 = vlaneseq
        %v1221 = vshrl.u32 %v1220, 7
        %v1222 = vsub.s32 %v1219, %v1221
        %v1223 = vrot.slane %v1216, %v1222
        %v1224 = vcombine.low %v1148, %v1149
        %v1226 = vunpack.c.l.s4 1983009808
        %v1227 = vunpack.c.0.s8 %v1226
        %v1228 = vlaneseq
        %v1229 = vshrl.u32 %v1228, 7
        %v1230 = vsub.s32 %v1227, %v1229
        %v1231 = vrot.slane %v1224, %v1230
        %v1232 = vcombine.low %v1207, %v1215
        %v1234 = vunpack.c.l.s4 1934713408
        %v1235 = vunpack.c.0.s8 %v1234
        %v1236 = vlaneseq
        %v1237 = vshrl.u32 %v1236, 7
        %v1238 = vsub.s32 %v1235, %v1237
        %v1239 = vrot.slane %v1232, %v1238
        %v1240 = vcombine.low %v1223, %v1231
        %v1242 = vunpack.c.l.s4 1934713408
        %v1243 = vunpack.c.0.s8 %v1242
        %v1244 = vlaneseq
        %v1245 = vshrl.u32 %v1244, 7
        %v1246 = vsub.s32 %v1243, %v1245
        %v1247 = vrot.slane %v1240, %v1246
        %v1248 = vcombine.low %v1239, %v1247
        %v1249 = vcombine.high %v1239, %v1247
        %1250 = vxpose.xlu0.b32.start [1/16] %v966, 128
        %1251 = vxpose.xlu0.b32.cont [2/16] %v1016, 128
        %1252 = vxpose.xlu0.b32.cont [3/16] 0.0, 128
        %1253 = vxpose.xlu0.b32.cont [4/16] 0.0, 128
        %1254 = vxpose.xlu0.b32.cont [5/16] 0.0, 128
        %1255 = vxpose.xlu0.b32.cont [6/16] 0.0, 128
        %1256 = vxpose.xlu0.b32.cont [7/16] 0.0, 128
        %1257 = vxpose.xlu0.b32.cont [8/16] 0.0, 128
        %1258 = vxpose.xlu0.b32.cont [9/16] 0.0, 128
        %1259 = vxpose.xlu0.b32.cont [10/16] 0.0, 128
        %1260 = vxpose.xlu0.b32.cont [11/16] 0.0, 128
        %1261 = vxpose.xlu0.b32.cont [12/16] 0.0, 128
        %1262 = vxpose.xlu0.b32.cont [13/16] 0.0, 128
        %1263 = vxpose.xlu0.b32.cont [14/16] 0.0, 128
        %1264 = vxpose.xlu0.b32.cont [15/16] 0.0, 128
        %1265 = vxpose.xlu0.b32.end [16/16] 0.0, 128
        %v1266 = vpop.trf.xlu0
        %v1267 = vpop.trf.xlu0
        %v1268 = vpop.trf.xlu0
        %v1269 = vpop.trf.xlu0
        %v1270 = vpop.trf.xlu0
        %v1271 = vpop.trf.xlu0
        %v1272 = vpop.trf.xlu0
        %v1273 = vpop.trf.xlu0
        %v1274 = vpop.trf.xlu0
        %v1275 = vpop.trf.xlu0
        %v1276 = vpop.trf.xlu0
        %v1277 = vpop.trf.xlu0
        %v1278 = vpop.trf.xlu0
        %v1279 = vpop.trf.xlu0
        %v1280 = vpop.trf.xlu0
        %v1281 = vpop.trf.xlu0
        %1282 = vxpose.xlu0.b32.start [1/16] %v967, 128
        %1283 = vxpose.xlu0.b32.cont [2/16] %v1017, 128
        %1284 = vxpose.xlu0.b32.cont [3/16] 0.0, 128
        %1285 = vxpose.xlu0.b32.cont [4/16] 0.0, 128
        %1286 = vxpose.xlu0.b32.cont [5/16] 0.0, 128
        %1287 = vxpose.xlu0.b32.cont [6/16] 0.0, 128
        %1288 = vxpose.xlu0.b32.cont [7/16] 0.0, 128
        %1289 = vxpose.xlu0.b32.cont [8/16] 0.0, 128
        %1290 = vxpose.xlu0.b32.cont [9/16] 0.0, 128
        %1291 = vxpose.xlu0.b32.cont [10/16] 0.0, 128
        %1292 = vxpose.xlu0.b32.cont [11/16] 0.0, 128
        %1293 = vxpose.xlu0.b32.cont [12/16] 0.0, 128
        %1294 = vxpose.xlu0.b32.cont [13/16] 0.0, 128
        %1295 = vxpose.xlu0.b32.cont [14/16] 0.0, 128
        %1296 = vxpose.xlu0.b32.cont [15/16] 0.0, 128
        %1297 = vxpose.xlu0.b32.end [16/16] 0.0, 128
        %v1298 = vpop.trf.xlu0
        %v1299 = vpop.trf.xlu0
        %v1300 = vpop.trf.xlu0
        %v1301 = vpop.trf.xlu0
        %v1302 = vpop.trf.xlu0
        %v1303 = vpop.trf.xlu0
        %v1304 = vpop.trf.xlu0
        %v1305 = vpop.trf.xlu0
        %v1306 = vpop.trf.xlu0
        %v1307 = vpop.trf.xlu0
        %v1308 = vpop.trf.xlu0
        %v1309 = vpop.trf.xlu0
        %v1310 = vpop.trf.xlu0
        %v1311 = vpop.trf.xlu0
        %v1312 = vpop.trf.xlu0
        %v1313 = vpop.trf.xlu0
        %v1314 = vpack.c.bf16 %v1267, %v1266
        %v1315 = vpack.c.bf16 %v1269, %v1268
        %v1316 = vpack.c.bf16 %v1271, %v1270
        %v1317 = vpack.c.bf16 %v1273, %v1272
        %v1318 = vpack.c.bf16 %v1275, %v1274
        %v1319 = vpack.c.bf16 %v1277, %v1276
        %v1320 = vpack.c.bf16 %v1279, %v1278
        %v1321 = vpack.c.bf16 %v1281, %v1280
        %v1322 = vpack.c.bf16 %v1299, %v1298
        %v1323 = vpack.c.bf16 %v1301, %v1300
        %v1324 = vpack.c.bf16 %v1303, %v1302
        %v1325 = vpack.c.bf16 %v1305, %v1304
        %v1326 = vpack.c.bf16 %v1307, %v1306
        %v1327 = vpack.c.bf16 %v1309, %v1308
        %v1328 = vpack.c.bf16 %v1311, %v1310
        %v1329 = vpack.c.bf16 %v1313, %v1312
        %v1346 = vunpack.c.l.b16 %v1314
        %v1347 = vunpack.c.h.b16 %v1314
        %v1348 = vunpack.c.l.b16 %v1315
        %v1349 = vunpack.c.h.b16 %v1315
        %v1350 = vunpack.c.l.b16 %v1316
        %v1351 = vunpack.c.h.b16 %v1316
        %v1352 = vunpack.c.l.b16 %v1317
        %v1353 = vunpack.c.h.b16 %v1317
        %v1354 = vunpack.c.l.b16 %v1318
        %v1355 = vunpack.c.h.b16 %v1318
        %v1356 = vunpack.c.l.b16 %v1319
        %v1357 = vunpack.c.h.b16 %v1319
        %v1358 = vunpack.c.l.b16 %v1320
        %v1359 = vunpack.c.h.b16 %v1320
        %v1360 = vunpack.c.l.b16 %v1321
        %v1361 = vunpack.c.h.b16 %v1321
        %v1362 = vunpack.c.l.b16 %v1322
        %v1363 = vunpack.c.h.b16 %v1322
        %v1364 = vunpack.c.l.b16 %v1323
        %v1365 = vunpack.c.h.b16 %v1323
        %v1366 = vunpack.c.l.b16 %v1324
        %v1367 = vunpack.c.h.b16 %v1324
        %v1368 = vunpack.c.l.b16 %v1325
        %v1369 = vunpack.c.h.b16 %v1325
        %v1370 = vunpack.c.l.b16 %v1326
        %v1371 = vunpack.c.h.b16 %v1326
        %v1372 = vunpack.c.l.b16 %v1327
        %v1373 = vunpack.c.h.b16 %v1327
        %v1374 = vunpack.c.l.b16 %v1328
        %v1375 = vunpack.c.h.b16 %v1328
        %v1376 = vunpack.c.l.b16 %v1329
        %v1377 = vunpack.c.h.b16 %v1329
        %v1378 = vpack.c.b16 %v1346, %v1346
        %v1379 = vpack.c.b16 %v1347, %v1347
        %v1380 = vpack.c.b16 %v1348, %v1348
        %v1381 = vpack.c.b16 %v1349, %v1349
        %v1382 = vpack.c.b16 %v1350, %v1350
        %v1383 = vpack.c.b16 %v1351, %v1351
        %v1384 = vpack.c.b16 %v1352, %v1352
        %v1385 = vpack.c.b16 %v1353, %v1353
        %v1386 = vpack.c.b16 %v1354, %v1354
        %v1387 = vpack.c.b16 %v1355, %v1355
        %v1388 = vpack.c.b16 %v1356, %v1356
        %v1389 = vpack.c.b16 %v1357, %v1357
        %v1390 = vpack.c.b16 %v1358, %v1358
        %v1391 = vpack.c.b16 %v1359, %v1359
        %v1392 = vpack.c.b16 %v1360, %v1360
        %v1393 = vpack.c.b16 %v1361, %v1361
        %v1394 = vpack.c.b16 %v1362, %v1362
        %v1395 = vpack.c.b16 %v1363, %v1363
        %v1396 = vpack.c.b16 %v1364, %v1364
        %v1397 = vpack.c.b16 %v1365, %v1365
        %v1398 = vpack.c.b16 %v1366, %v1366
        %v1399 = vpack.c.b16 %v1367, %v1367
        %v1400 = vpack.c.b16 %v1368, %v1368
        %v1401 = vpack.c.b16 %v1369, %v1369
        %v1402 = vpack.c.b16 %v1370, %v1370
        %v1403 = vpack.c.b16 %v1371, %v1371
        %v1404 = vpack.c.b16 %v1372, %v1372
        %v1405 = vpack.c.b16 %v1373, %v1373
        %v1406 = vpack.c.b16 %v1374, %v1374
        %v1407 = vpack.c.b16 %v1375, %v1375
        %v1408 = vpack.c.b16 %v1376, %v1376
        %v1409 = vpack.c.b16 %v1377, %v1377
        %vm1442 = vcmask 125952
        %1443 = vst.msk [vmem:[%s284] sm:$0xf] %vm1442, %v1378
        %1444 = vst.msk [vmem:[%s284 + $0x4] sm:$0xf] %vm1442, %v1379
        %1445 = vst.msk [vmem:[%s284 + $0x8] sm:$0xf] %vm1442, %v1380
        %1446 = vst.msk [vmem:[%s284 + $0xc] sm:$0xf] %vm1442, %v1381
        %1447 = vst.msk [vmem:[%s284 + $0x10] sm:$0xf] %vm1442, %v1382
        %1448 = vst.msk [vmem:[%s284 + $0x14] sm:$0xf] %vm1442, %v1383
        %1449 = vst.msk [vmem:[%s284 + $0x18] sm:$0xf] %vm1442, %v1384
        %1450 = vst.msk [vmem:[%s284 + $0x1c] sm:$0xf] %vm1442, %v1385
        %1451 = vst.msk [vmem:[%s284 + $0x20] sm:$0xf] %vm1442, %v1386
        %1452 = vst.msk [vmem:[%s284 + $0x24] sm:$0xf] %vm1442, %v1387
        %1453 = vst.msk [vmem:[%s284 + $0x28] sm:$0xf] %vm1442, %v1388
        %1454 = vst.msk [vmem:[%s284 + $0x2c] sm:$0xf] %vm1442, %v1389
        %1455 = vst.msk [vmem:[%s284 + $0x30] sm:$0xf] %vm1442, %v1390
        %1456 = vst.msk [vmem:[%s284 + $0x34] sm:$0xf] %vm1442, %v1391
        %1457 = vst.msk [vmem:[%s284 + $0x38] sm:$0xf] %vm1442, %v1392
        %1458 = vst.msk [vmem:[%s284 + $0x3c] sm:$0xf] %vm1442, %v1393
        %1459 = vst.msk [vmem:[%s284 + $0x40] sm:$0xf] %vm1442, %v1394
        %1460 = vst.msk [vmem:[%s284 + $0x44] sm:$0xf] %vm1442, %v1395
        %1461 = vst.msk [vmem:[%s284 + $0x48] sm:$0xf] %vm1442, %v1396
        %1462 = vst.msk [vmem:[%s284 + $0x4c] sm:$0xf] %vm1442, %v1397
        %1463 = vst.msk [vmem:[%s284 + $0x50] sm:$0xf] %vm1442, %v1398
        %1464 = vst.msk [vmem:[%s284 + $0x54] sm:$0xf] %vm1442, %v1399
        %1465 = vst.msk [vmem:[%s284 + $0x58] sm:$0xf] %vm1442, %v1400
        %1466 = vst.msk [vmem:[%s284 + $0x5c] sm:$0xf] %vm1442, %v1401
        %1467 = vst.msk [vmem:[%s284 + $0x60] sm:$0xf] %vm1442, %v1402
        %1468 = vst.msk [vmem:[%s284 + $0x64] sm:$0xf] %vm1442, %v1403
        %1469 = vst.msk [vmem:[%s284 + $0x68] sm:$0xf] %vm1442, %v1404
        %1470 = vst.msk [vmem:[%s284 + $0x6c] sm:$0xf] %vm1442, %v1405
        %1471 = vst.msk [vmem:[%s284 + $0x70] sm:$0xf] %vm1442, %v1406
        %1472 = vst.msk [vmem:[%s284 + $0x74] sm:$0xf] %vm1442, %v1407
        %1473 = vst.msk [vmem:[%s284 + $0x78] sm:$0xf] %vm1442, %v1408
        %1474 = vst.msk [vmem:[%s284 + $0x7c] sm:$0xf] %vm1442, %v1409
        %v1475 = vpack.c.bf16 %v1248, %v1198
        %v1476 = vpack.c.bf16 %v1249, %v1199
        %v1479 = vunpack.c.l.b16 %v1475
        %v1480 = vunpack.c.h.b16 %v1475
        %v1481 = vunpack.c.l.b16 %v1476
        %v1482 = vunpack.c.h.b16 %v1476
        %v1483 = vpack.c.b16 %v1479, %v1479
        %v1484 = vpack.c.b16 %v1480, %v1480
        %v1485 = vpack.c.b16 %v1481, %v1481
        %v1486 = vpack.c.b16 %v1482, %v1482
        %1491 = vst [vmem:[%s279] sm:$0xf] %v1483
        %1492 = vst [vmem:[%s279 + $0x4] sm:$0xf] %v1484
        %1493 = vst [vmem:[%s279 + $0x8] sm:$0xf] %v1485
        %1494 = vst [vmem:[%s279 + $0xc] sm:$0xf] %v1486
        %p1495 = scmp.lt.s32.totalorder %s24, 1
        %s1496 = scalar_select %p1495, %s24, 1
        %s1497 = smul.addr %s1496, 32
        %s1498 = smul.addr %s1497, 4
        %s1499 = scalar_lea.vmem %s4, %s1498
        %s1500 = sand.u32 %s147, 1
        %s1501 = scalar_lea.sflag [#allocation4], %s1500
        %s1502 = sand.u32 %s147, 1
        %s1503 = smul.addr %s1502, 16
        %s1504 = scalar_lea.vmem [#allocation8], %s1503
        // Predicated region
        $region49: #{tpu_custom_call.1} parent=35 // pred_check
          %p1505 = pneg %p131
        $region50: #{tpu_custom_call.1} parent=35 // pred_check_branch
          %1507 = sbr.rel (%p1505) target = $region52
        $region51: #{tpu_custom_call.1} parent=35 // pred_region
          _
        $region52: #{tpu_custom_call.1} parent=35 // pred_fallthru
          _
        // Predicated region
        $region53: #{tpu_custom_call.1} parent=35 // pred_check
          %p1508 = pneg %p157
        $region54: #{tpu_custom_call.1} parent=35 // pred_check_branch
          %1510 = sbr.rel (%p1508) target = $region56
        $region55: #{tpu_custom_call.1} parent=35 // pred_region
          %s1512 = ssub.s32 256, 256
          %1513 = vsyncadd %s1501, %s1512
          %s1514 = smul.addr %s24, 4
          %s1515 = smul.addr %s1514, 64
          %s1516 = scalar_lea.hbm %s5, %s1515
          %s1517 = sshll.u32 %s1504, 4
          %s1518 = int_to_ptr.vmem [resolvable:$true] %s1517
          %1523 = dma.vmem_to_hbm [thread:$0]  %s1518, 256, %s1516, %s1501, 64, 64, 4
        $region56: #{tpu_custom_call.1} parent=35 // pred_fallthru
          _
      $region36: #{tpu_custom_call.1} parent=5 // pred_fallthru
        _
      %p1524 = scmp.le.s32.totalorder 2, %s19
      // Predicated region
      $region57: #{tpu_custom_call.1} parent=5 // pred_check
        %p1525 = pneg %p1524
      $region58: #{tpu_custom_call.1} parent=5 // pred_check_branch
        %1527 = sbr.rel (%p1525) target = $region60
      $region59: #{tpu_custom_call.1} parent=5 // pred_region
        %s1528 = ssub.s32 %s19, 2
        // Predicated region
        $region61: #{tpu_custom_call.1} parent=59 // pred_check
          %p1529 = pneg %p137
        $region62: #{tpu_custom_call.1} parent=59 // pred_check_branch
          %1531 = sbr.rel (%p1529) target = $region64
        $region63: #{tpu_custom_call.1} parent=59 // pred_region
          %p1532 = scmp.lt.s32.totalorder %s25, 1
          %s1533 = scalar_select %p1532, %s25, 1
          %s1534 = smul.addr %s1533, 32
          %s1535 = smul.addr %s1534, 4
          %s1536 = scalar_lea.vmem %s4, %s1535
        $region64: #{tpu_custom_call.1} parent=59 // pred_fallthru
          _
        // Predicated region
        $region65: #{tpu_custom_call.1} parent=59 // pred_check
          %p1537 = pneg %p163
        $region66: #{tpu_custom_call.1} parent=59 // pred_check_branch
          %1539 = sbr.rel (%p1537) target = $region68
        $region67: #{tpu_custom_call.1} parent=59 // pred_region
          %s1540 = sand.u32 %s148, 1
          %s1541 = scalar_lea.sflag [#allocation4], %s1540
          %s1542 = sand.u32 %s148, 1
          %s1543 = smul.addr %s1542, 16
          %s1544 = scalar_lea.vmem [#allocation8], %s1543
          %1545 = dma.done %s1541, 256
        $region68: #{tpu_custom_call.1} parent=59 // pred_fallthru
          _
      $region60: #{tpu_custom_call.1} parent=5 // pred_fallthru
        _
    $region6: #{tpu_custom_call.1} parent=1 // loop_footer
      %s23 = sadd.s32 1, %s19
    $region7: #{tpu_custom_call.1} parent=1 // loop_footer_branch
      %18 = sbr.rel target = $region3
    $region8: #{tpu_custom_call.1} parent=1 // loop_exit
      _
    %1546 = vsyncpa [#allocation3], 1
    %s1547 = scalar_lea.sflag [#allocation3], 1
    %1548 = vsyncpa %s1547, 1
    %1549 = vsyncpa [#allocation6], 1
    %1550 = vsyncpa [#allocation4], 1
    %s1551 = scalar_lea.sflag [#allocation4], 1
    %1552 = vsyncpa %s1551, 1

</llo_original>
